<compile_context>
chip_gen: v7x
topology: tpu7x:2x2x1
jax: 0.10.0
libtpu: 0.0.40
codegen_flags: <defaults>
</compile_context>

<pallas_src>
import functools

import jax
import jax.numpy as jnp
import numpy as np
from jax import lax
from jax.experimental import pallas as pl
from jax.experimental.pallas import tpu as pltpu

LEAKY_SLOPE = 0.2     # relu_slope default
IN_EPS = 1e-5         # nn.InstanceNorm2d default eps
SIMAM_LAMBDA = 1e-4   # SimAM e_lambda default


def _leaky(x, slope=LEAKY_SLOPE):
    return jnp.where(x >= 0, x, slope * x)


def _build_patches_T(x, wcol, H, W, mmdt):
    """im2col in transposed layout.

    x: (C, H*W) activation (channel on sublanes, pixels on lanes).
    Returns (9*C, H*W) patches in `mmdt`; row (ky*3 + kx)*C + c holds the
    zero-padded value x[c, h+ky-1, w+kx-1] for output pixel (h, w).
    """
    C, HW = x.shape
    xm = x.astype(mmdt)
    zpad = jnp.zeros((C, W + 1), mmdt)
    xp = jnp.concatenate([zpad, xm, zpad], axis=1)          # (C, HW + 2*(W+1))
    taps = []
    for dy in (-1, 0, 1):
        for dx in (-1, 0, 1):
            off = (W + 1) + dy * W + dx
            t = xp[:, off:off + HW]                         # lane shift by dy*W+dx
            if dx == -1:                                    # w == 0 has no left nbr
                t = jnp.where(wcol != 0, t, 0.0)
            elif dx == 1:                                   # w == W-1 has no right nbr
                t = jnp.where(wcol != W - 1, t, 0.0)
            taps.append(t)
    return jnp.concatenate(taps, axis=0)                    # sublane concat -> (9*C, HW)


def _conv3x3_T(x, wT_ref, bias, wcol, H, W, mmdt):
    """3x3 SAME conv, transposed im2col: (Cout, 9*Cin) x (9*Cin, HW) -> (Cout, HW) f32."""
    patches = _build_patches_T(x, wcol, H, W, mmdt)
    return jnp.dot(wT_ref[...], patches,
                   preferred_element_type=jnp.float32) + bias


def conv_block_kernel(x_ref, w1_ref, b1_ref, g_ref, bt_ref,
                      w2_ref, b2_ref, w13_ref, b13_ref,
                      w3_ref, b3_ref, w4_ref, b4_ref, out_ref,
                      *, H, W, Cin, Cout, Ch, is_last_layer, mmdt):
    HW = H * W
    # lane index -> w coordinate; used by the conv W-boundary masks (built once).
    wcol = lax.broadcasted_iota(jnp.int32, (1, HW), 1) % W

    x = x_ref[...].astype(jnp.float32)                      # (Cin, HW), lanes = pixels

    # ---- conv1: 3x3, Cin -> Cin ----
    x1 = _conv3x3_T(x, w1_ref, b1_ref[...], wcol, H, W, mmdt)

    # ---- (half) instance norm as per-channel scale/shift (stats over the lane axis) ----
    chmask = lax.broadcasted_iota(jnp.int32, (Cin, 1), 0) < Ch
    mu = jnp.mean(x1, axis=1, keepdims=True)                                # (Cin, 1)
    var = jnp.mean(jnp.square(x1 - mu), axis=1, keepdims=True)              # biased, like torch
    inv = jnp.where(chmask, lax.rsqrt(var + IN_EPS), 1.0)                   # rsqrt -> EUP
    scale = g_ref[...] * inv                    # gamma padded with 1 for untouched half
    shift = bt_ref[...] - jnp.where(chmask, mu, 0.0) * scale
    x1 = x1 * scale + shift

    # ---- relu1 ----
    x1 = _leaky(x1)

    # ---- SimAM attention (per-channel stats over lanes) ----
    n = HW - 1
    mu1 = jnp.mean(x1, axis=1, keepdims=True)
    d = jnp.square(x1 - mu1)
    inv_den = 1.0 / (4.0 * (jnp.sum(d, axis=1, keepdims=True) / n + SIMAM_LAMBDA))
    y = d * inv_den + 0.5
    x1 = x1 * (1.0 / (1.0 + jnp.exp(-y)))                                   # exp -> EUP

    # ---- conv2: 3x3, Cin -> Cin (on x1) ----
    x2 = _conv3x3_T(x1, w2_ref, b2_ref[...], wcol, H, W, mmdt)

    # ---- conv1_3: 1x1, Cin -> Cin (on the block input) ----
    x13 = jnp.dot(w13_ref[...], x.astype(mmdt),
                  preferred_element_type=jnp.float32) + b13_ref[...]

    # ---- conv3 over concat([x2, x13]): ONE fused K = 9*(2*Cin) matmul ----
    xc = jnp.concatenate([x2, x13], axis=0)                                 # sublane concat
    x3 = _leaky(_conv3x3_T(xc, w3_ref, b3_ref[...], wcol, H, W, mmdt))      # (Cout, HW)

    # ---- conv4: 3x3, Cout -> Cout, then relu4 (tanh if last layer) ----
    x4 = _conv3x3_T(x3, w4_ref, b4_ref[...], wcol, H, W, mmdt)
    x4 = jnp.tanh(x4) if is_last_layer else _leaky(x4)

    out_ref[...] = x4.astype(out_ref.dtype)                 # dense (Cout, HW) store


def conv_block_pallas(x, p, *, is_last_layer=False, use_hin=True,
                      matmul_dtype=jnp.float32):
    """x: (N, Cin, H, W) NCHW (PyTorch layout).  p: OIHW conv weights, 1-D biases."""
    N, Cin, H, W = x.shape
    Cout = p["w4"].shape[0]
    Ch = Cin // 2 if use_hin else Cin
    HW = H * W
    mmdt = matmul_dtype
    assert p["gamma"].size == Ch and p["beta"].size == Ch, \
        "norm affine params must match the use_hin setting"

    def flat3(w):    # OIHW (Co,Ci,3,3) -> (Co, 9*Ci), col = (ky*3 + kx)*Ci + ci
        co, ci = w.shape[0], w.shape[1]
        return jnp.transpose(w, (0, 2, 3, 1)).reshape(co, 9 * ci).astype(mmdt)

    def colvec(v, c, fill):   # 1-D param -> (c, 1) f32 column, padded with `fill`
        v = jnp.asarray(v, jnp.float32).reshape(-1)
        if v.shape[0] < c:
            v = jnp.concatenate([v, jnp.full((c - v.shape[0],), fill, jnp.float32)])
        return v.reshape(c, 1)

    weights = [
        flat3(p["w1"]), colvec(p["b1"], Cin, 0.0),
        colvec(p["gamma"], Cin, 1.0), colvec(p["beta"], Cin, 0.0),
        flat3(p["w2"]), colvec(p["b2"], Cin, 0.0),
        jnp.asarray(p["w13"], jnp.float32).reshape(Cin, Cin).astype(mmdt),
        colvec(p["b13"], Cin, 0.0),
        flat3(p["w3"]), colvec(p["b3"], Cout, 0.0),
        flat3(p["w4"]), colvec(p["b4"], Cout, 0.0),
    ]

    in_specs = [pl.BlockSpec((None, Cin, HW), lambda n: (n, 0, 0))]
    in_specs += [pl.BlockSpec(w.shape, lambda n: (0, 0)) for w in weights]

    kernel = functools.partial(conv_block_kernel, H=H, W=W, Cin=Cin, Cout=Cout,
                               Ch=Ch, is_last_layer=is_last_layer, mmdt=mmdt)

    # Advisory cost estimate + explicit VMEM budget (review items).
    flops = 2 * N * HW * (9 * Cin * Cin + 9 * Cin * Cin + Cin * Cin
                          + 9 * (2 * Cin) * Cout + 9 * Cout * Cout)
    transcendentals = N * HW * (Cin + Cout)
    w_bytes = sum(int(np.prod(w.shape)) * w.dtype.itemsize for w in weights)
    bytes_accessed = (N * Cin * HW + N * Cout * HW) * x.dtype.itemsize + w_bytes
    mm_item = np.dtype(mmdt).itemsize
    work_bytes = (4 * (Cin + Cout) * HW * 4        # double-buffered in/out blocks (f32)
                  + w_bytes
                  + 2 * 18 * Cin * HW * mm_item    # largest im2col patch temporary (conv3)
                  + 12 * max(Cin, Cout) * HW * 4)  # elementwise f32 temporaries
    vmem_limit = int(min(32 * 2 ** 20, max(4 * 2 ** 20, 2 * work_bytes)))

    out = pl.pallas_call(
        kernel,
        out_shape=jax.ShapeDtypeStruct((N, Cout, HW), x.dtype),
        grid=(N,),
        in_specs=in_specs,
        out_specs=pl.BlockSpec((None, Cout, HW), lambda n: (n, 0, 0)),
        compiler_params=pltpu.CompilerParams(
            dimension_semantics=("parallel",),
            vmem_limit_bytes=vmem_limit),
        cost_estimate=pl.CostEstimate(flops=flops,
                                      transcendentals=transcendentals,
                                      bytes_accessed=bytes_accessed),
    )(x.reshape(N, Cin, HW), *weights)
    return out.reshape(N, Cout, H, W)


# ---------------- pure-JAX reference (for correctness check) ----------------
def conv_block_ref(x, p, *, is_last_layer=False, use_hin=True):
    dn = ("NCHW", "OIHW", "NCHW")

    def conv(inp, w, b):
        return lax.conv_general_dilated(
            inp, w, (1, 1), "SAME", dimension_numbers=dn,
            precision=lax.Precision.HIGHEST) + b.reshape(1, -1, 1, 1)

    Cin = x.shape[1]
    Ch = Cin // 2 if use_hin else Cin
    x1 = conv(x, p["w1"], p["b1"])
    a, rest = x1[:, :Ch], x1[:, Ch:]
    mu = jnp.mean(a, axis=(2, 3), keepdims=True)
    var = jnp.mean((a - mu) ** 2, axis=(2, 3), keepdims=True)
    a = (a - mu) / jnp.sqrt(var + IN_EPS)
    a = a * p["gamma"].reshape(1, -1, 1, 1) + p["beta"].reshape(1, -1, 1, 1)
    x1 = jnp.concatenate([a, rest], axis=1)
    x1 = jnp.where(x1 >= 0, x1, LEAKY_SLOPE * x1)
    n = x.shape[2] * x.shape[3] - 1
    mu1 = jnp.mean(x1, axis=(2, 3), keepdims=True)
    d = (x1 - mu1) ** 2
    y = d / (4.0 * (jnp.sum(d, axis=(2, 3), keepdims=True) / n + SIMAM_LAMBDA)) + 0.5
    x1 = x1 * jax.nn.sigmoid(y)
    x2 = conv(x1, p["w2"], p["b2"])
    x13 = conv(x, p["w13"], p["b13"])
    x3 = conv(jnp.concatenate([x2, x13], axis=1), p["w3"], p["b3"])
    x3 = jnp.where(x3 >= 0, x3, LEAKY_SLOPE * x3)
    x4 = conv(x3, p["w4"], p["b4"])
    return jnp.tanh(x4) if is_last_layer else jnp.where(x4 >= 0, x4, LEAKY_SLOPE * x4)


if __name__ == "__main__":
    key = jax.random.PRNGKey(0)
    N, H, W = 2, 16, 16
    Cin, Cout = 8, 8                      # in_channels=8, out_channels=8
    ks = jax.random.split(key, 13)

    params = {
        "w1":    0.1 * jax.random.normal(ks[0], (Cin, Cin, 3, 3), jnp.float32),
        "b1":   0.05 * jax.random.normal(ks[1], (Cin,), jnp.float32),
        "gamma": 1.0 + 0.1 * jax.random.normal(ks[2], (Cin // 2,), jnp.float32),
        "beta":  0.1 * jax.random.normal(ks[3], (Cin // 2,), jnp.float32),
        "w2":    0.1 * jax.random.normal(ks[4], (Cin, Cin, 3, 3), jnp.float32),
        "b2":   0.05 * jax.random.normal(ks[5], (Cin,), jnp.float32),
        "w13":   0.1 * jax.random.normal(ks[6], (Cin, Cin, 1, 1), jnp.float32),
        "b13":  0.05 * jax.random.normal(ks[7], (Cin,), jnp.float32),
        "w3":    0.1 * jax.random.normal(ks[8], (Cout, 2 * Cin, 3, 3), jnp.float32),
        "b3":   0.05 * jax.random.normal(ks[9], (Cout,), jnp.float32),
        "w4":    0.1 * jax.random.normal(ks[10], (Cout, Cout, 3, 3), jnp.float32),
        "b4":   0.05 * jax.random.normal(ks[11], (Cout,), jnp.float32),
    }
    # NCHW input, same as the PyTorch module.
    x = jax.random.normal(ks[12], (N, Cin, H, W), jnp.float32)

    ref = conv_block_ref(x, params)

    # f32 MXU operands: matches the HIGHEST-precision reference to 1e-3.
    out_f32 = conv_block_pallas(x, params, matmul_dtype=jnp.float32)
    jax.block_until_ready(out_f32)
    np.testing.assert_allclose(np.asarray(out_f32), np.asarray(ref),
                               rtol=1e-3, atol=1e-3)

    # bf16 MXU operands (recommended on v6e/v7x), f32 accumulation.
    out_bf16 = conv_block_pallas(x, params, matmul_dtype=jnp.bfloat16)
    jax.block_until_ready(out_bf16)
    np.testing.assert_allclose(np.asarray(out_bf16), np.asarray(ref),
                               rtol=3e-2, atol=3e-2)

    print("KERNEL_OK")
</pallas_src>

<mosaic_0001>
module attributes {stable_mosaic.version = 11 : i64} {
  func.func @conv_block_kernel(%arg0: i32, %arg1: memref<1x8x256xf32, #tpu.memory_space<vmem>>, %arg2: memref<8x72xf32, #tpu.memory_space<vmem>>, %arg3: memref<8x1xf32, #tpu.memory_space<vmem>>, %arg4: memref<8x1xf32, #tpu.memory_space<vmem>>, %arg5: memref<8x1xf32, #tpu.memory_space<vmem>>, %arg6: memref<8x72xf32, #tpu.memory_space<vmem>>, %arg7: memref<8x1xf32, #tpu.memory_space<vmem>>, %arg8: memref<8x8xf32, #tpu.memory_space<vmem>>, %arg9: memref<8x1xf32, #tpu.memory_space<vmem>>, %arg10: memref<8x144xf32, #tpu.memory_space<vmem>>, %arg11: memref<8x1xf32, #tpu.memory_space<vmem>>, %arg12: memref<8x72xf32, #tpu.memory_space<vmem>>, %arg13: memref<8x1xf32, #tpu.memory_space<vmem>>, %arg14: memref<1x8x256xf32, #tpu.memory_space<vmem>>) attributes {dimension_semantics = [#tpu.dimension_semantics<parallel>], iteration_bounds = array<i64: 2>, scalar_prefetch = 0 : i64, scratch_operands = 0 : i64, tpu.core_type = #tpu.core_type<tc>, window_params = [{transform_indices = @transform_0, window_bounds = array<i64: 1, 8, 256>}, {pipeline_mode = #tpu.pipeline_mode<synchronous>, transform_indices = @transform_1, window_bounds = array<i64: 8, 72>}, {pipeline_mode = #tpu.pipeline_mode<synchronous>, transform_indices = @transform_2, window_bounds = array<i64: 8, 1>}, {pipeline_mode = #tpu.pipeline_mode<synchronous>, transform_indices = @transform_3, window_bounds = array<i64: 8, 1>}, {pipeline_mode = #tpu.pipeline_mode<synchronous>, transform_indices = @transform_4, window_bounds = array<i64: 8, 1>}, {pipeline_mode = #tpu.pipeline_mode<synchronous>, transform_indices = @transform_5, window_bounds = array<i64: 8, 72>}, {pipeline_mode = #tpu.pipeline_mode<synchronous>, transform_indices = @transform_6, window_bounds = array<i64: 8, 1>}, {pipeline_mode = #tpu.pipeline_mode<synchronous>, transform_indices = @transform_7, window_bounds = array<i64: 8, 8>}, {pipeline_mode = #tpu.pipeline_mode<synchronous>, transform_indices = @transform_8, window_bounds = array<i64: 8, 1>}, {pipeline_mode = #tpu.pipeline_mode<synchronous>, transform_indices = @transform_9, window_bounds = array<i64: 8, 144>}, {pipeline_mode = #tpu.pipeline_mode<synchronous>, transform_indices = @transform_10, window_bounds = array<i64: 8, 1>}, {pipeline_mode = #tpu.pipeline_mode<synchronous>, transform_indices = @transform_11, window_bounds = array<i64: 8, 72>}, {pipeline_mode = #tpu.pipeline_mode<synchronous>, transform_indices = @transform_12, window_bounds = array<i64: 8, 1>}, {transform_indices = @transform_13, window_bounds = array<i64: 1, 8, 256>}]} {
    %0 = tpu.iota {dimensions = array<i32: 1>} : vector<1x256xi32>
    %c16_i32 = arith.constant 16 : i32
    %c0_i32 = arith.constant 0 : i32
    %1 = arith.cmpi eq, %c16_i32, %c0_i32 : i32
    %c1_i32 = arith.constant 1 : i32
    %2 = arith.select %1, %c1_i32, %c16_i32 : i32
    %3 = vector.broadcast %2 : i32 to vector<1x256xi32>
    %4 = arith.remsi %0, %3 : vector<1x256xi32>
    %c0_i32_0 = arith.constant 0 : i32
    %5 = vector.broadcast %c0_i32_0 : i32 to vector<1x256xi32>
    %6 = arith.cmpi ne, %4, %5 : vector<1x256xi32>
    %c0_i32_1 = arith.constant 0 : i32
    %7 = vector.broadcast %c0_i32_1 : i32 to vector<1x256xi32>
    %8 = arith.cmpi slt, %4, %7 : vector<1x256xi32>
    %c0_i32_2 = arith.constant 0 : i32
    %9 = arith.cmpi slt, %2, %c0_i32_2 : i32
    %10 = vector.broadcast %9 : i1 to vector<1x256xi1>
    %11 = vector.broadcast %10 : vector<1x256xi1> to vector<1x256xi1>
    %12 = arith.xori %8, %11 : vector<1x256xi1>
    %13 = arith.andi %12, %6 : vector<1x256xi1>
    %14 = vector.broadcast %2 : i32 to vector<1x256xi32>
    %15 = arith.addi %4, %14 : vector<1x256xi32>
    %16 = arith.select %13, %15, %4 : vector<1x256xi1>, vector<1x256xi32>
    %c0 = arith.constant 0 : index
    %c0_3 = arith.constant 0 : index
    %c0_4 = arith.constant 0 : index
    %17 = vector.load %arg1[%c0, %c0_3, %c0_4] : memref<1x8x256xf32, #tpu.memory_space<vmem>>, vector<1x8x256xf32>
    %18 = vector.shape_cast %17 : vector<1x8x256xf32> to vector<8x256xf32>
    %c0_5 = arith.constant 0 : index
    %c0_6 = arith.constant 0 : index
    %19 = vector.load %arg3[%c0_5, %c0_6] : memref<8x1xf32, #tpu.memory_space<vmem>>, vector<8x1xf32>
    %cst = arith.constant 0.000000e+00 : f32
    %20 = vector.broadcast %cst : f32 to vector<8x17xf32>
    %21 = tpu.concatenate %20, %18, %20 in 1 : vector<8x17xf32>, vector<8x256xf32>, vector<8x17xf32> -> vector<8x290xf32>
    %22 = vector.extract_strided_slice %21 {offsets = [0, 0], sizes = [8, 256], strides = [1, 1]} : vector<8x290xf32> to vector<8x256xf32>
    %c0_i32_7 = arith.constant 0 : i32
    %23 = vector.broadcast %c0_i32_7 : i32 to vector<1x256xi32>
    %24 = arith.cmpi ne, %16, %23 : vector<1x256xi32>
    %cst_8 = arith.constant 0.000000e+00 : f32
    %25 = vector.shape_cast %24 : vector<1x256xi1> to vector<1x256xi1>
    %26 = vector.broadcast %25 : vector<1x256xi1> to vector<8x256xi1>
    %27 = vector.broadcast %cst_8 : f32 to vector<8x256xf32>
    %28 = arith.select %26, %22, %27 : vector<8x256xi1>, vector<8x256xf32>
    %29 = vector.extract_strided_slice %21 {offsets = [0, 1], sizes = [8, 256], strides = [1, 1]} : vector<8x290xf32> to vector<8x256xf32>
    %30 = vector.extract_strided_slice %21 {offsets = [0, 2], sizes = [8, 256], strides = [1, 1]} : vector<8x290xf32> to vector<8x256xf32>
    %c15_i32 = arith.constant 15 : i32
    %31 = vector.broadcast %c15_i32 : i32 to vector<1x256xi32>
    %32 = arith.cmpi ne, %16, %31 : vector<1x256xi32>
    %cst_9 = arith.constant 0.000000e+00 : f32
    %33 = vector.shape_cast %32 : vector<1x256xi1> to vector<1x256xi1>
    %34 = vector.broadcast %33 : vector<1x256xi1> to vector<8x256xi1>
    %35 = vector.broadcast %cst_9 : f32 to vector<8x256xf32>
    %36 = arith.select %34, %30, %35 : vector<8x256xi1>, vector<8x256xf32>
    %37 = vector.extract_strided_slice %21 {offsets = [0, 16], sizes = [8, 256], strides = [1, 1]} : vector<8x290xf32> to vector<8x256xf32>
    %c0_i32_10 = arith.constant 0 : i32
    %38 = vector.broadcast %c0_i32_10 : i32 to vector<1x256xi32>
    %39 = arith.cmpi ne, %16, %38 : vector<1x256xi32>
    %cst_11 = arith.constant 0.000000e+00 : f32
    %40 = vector.shape_cast %39 : vector<1x256xi1> to vector<1x256xi1>
    %41 = vector.broadcast %40 : vector<1x256xi1> to vector<8x256xi1>
    %42 = vector.broadcast %cst_11 : f32 to vector<8x256xf32>
    %43 = arith.select %41, %37, %42 : vector<8x256xi1>, vector<8x256xf32>
    %44 = vector.extract_strided_slice %21 {offsets = [0, 17], sizes = [8, 256], strides = [1, 1]} : vector<8x290xf32> to vector<8x256xf32>
    %45 = vector.extract_strided_slice %21 {offsets = [0, 18], sizes = [8, 256], strides = [1, 1]} : vector<8x290xf32> to vector<8x256xf32>
    %c15_i32_12 = arith.constant 15 : i32
    %46 = vector.broadcast %c15_i32_12 : i32 to vector<1x256xi32>
    %47 = arith.cmpi ne, %16, %46 : vector<1x256xi32>
    %cst_13 = arith.constant 0.000000e+00 : f32
    %48 = vector.shape_cast %47 : vector<1x256xi1> to vector<1x256xi1>
    %49 = vector.broadcast %48 : vector<1x256xi1> to vector<8x256xi1>
    %50 = vector.broadcast %cst_13 : f32 to vector<8x256xf32>
    %51 = arith.select %49, %45, %50 : vector<8x256xi1>, vector<8x256xf32>
    %52 = vector.extract_strided_slice %21 {offsets = [0, 32], sizes = [8, 256], strides = [1, 1]} : vector<8x290xf32> to vector<8x256xf32>
    %c0_i32_14 = arith.constant 0 : i32
    %53 = vector.broadcast %c0_i32_14 : i32 to vector<1x256xi32>
    %54 = arith.cmpi ne, %16, %53 : vector<1x256xi32>
    %cst_15 = arith.constant 0.000000e+00 : f32
    %55 = vector.shape_cast %54 : vector<1x256xi1> to vector<1x256xi1>
    %56 = vector.broadcast %55 : vector<1x256xi1> to vector<8x256xi1>
    %57 = vector.broadcast %cst_15 : f32 to vector<8x256xf32>
    %58 = arith.select %56, %52, %57 : vector<8x256xi1>, vector<8x256xf32>
    %59 = vector.extract_strided_slice %21 {offsets = [0, 33], sizes = [8, 256], strides = [1, 1]} : vector<8x290xf32> to vector<8x256xf32>
    %60 = vector.extract_strided_slice %21 {offsets = [0, 34], sizes = [8, 256], strides = [1, 1]} : vector<8x290xf32> to vector<8x256xf32>
    %c15_i32_16 = arith.constant 15 : i32
    %61 = vector.broadcast %c15_i32_16 : i32 to vector<1x256xi32>
    %62 = arith.cmpi ne, %16, %61 : vector<1x256xi32>
    %cst_17 = arith.constant 0.000000e+00 : f32
    %63 = vector.shape_cast %62 : vector<1x256xi1> to vector<1x256xi1>
    %64 = vector.broadcast %63 : vector<1x256xi1> to vector<8x256xi1>
    %65 = vector.broadcast %cst_17 : f32 to vector<8x256xf32>
    %66 = arith.select %64, %60, %65 : vector<8x256xi1>, vector<8x256xf32>
    %67 = tpu.concatenate %28, %29, %36, %43, %44, %51, %58, %59, %66 in 0 : vector<8x256xf32>, vector<8x256xf32>, vector<8x256xf32>, vector<8x256xf32>, vector<8x256xf32>, vector<8x256xf32>, vector<8x256xf32>, vector<8x256xf32>, vector<8x256xf32> -> vector<72x256xf32>
    %c0_18 = arith.constant 0 : index
    %c0_19 = arith.constant 0 : index
    %68 = vector.load %arg2[%c0_18, %c0_19] : memref<8x72xf32, #tpu.memory_space<vmem>>, vector<8x72xf32>
    %cst_20 = arith.constant dense<0.000000e+00> : vector<8x256xf32>
    %69 = tpu.matmul %68, %67, %cst_20 {dimension_numbers = #tpu.dot_dimension_numbers<[1], [0], [0], [1], [0, 0, 1, 1], [], []>} : vector<8x72xf32>, vector<72x256xf32>, vector<8x256xf32> -> vector<8x256xf32>
    %70 = vector.broadcast %19 : vector<8x1xf32> to vector<8x256xf32>
    %71 = arith.addf %69, %70 : vector<8x256xf32>
    %72 = tpu.iota {dimensions = array<i32: 0>} : vector<8x1xi32>
    %c4_i32 = arith.constant 4 : i32
    %73 = vector.broadcast %c4_i32 : i32 to vector<8x1xi32>
    %74 = arith.cmpi slt, %72, %73 : vector<8x1xi32>
    %cst_21 = arith.constant dense<0.000000e+00> : vector<8xf32>
    %75 = vector.multi_reduction <add>, %71, %cst_21 [1] : vector<8x256xf32> to vector<8xf32>
    %76 = vector.shape_cast %75 : vector<8xf32> to vector<8x1xf32>
    %cst_22 = arith.constant 2.560000e+02 : f32
    %77 = vector.broadcast %cst_22 : f32 to vector<8x1xf32>
    %78 = arith.divf %76, %77 : vector<8x1xf32>
    %79 = vector.broadcast %78 : vector<8x1xf32> to vector<8x256xf32>
    %80 = arith.subf %71, %79 : vector<8x256xf32>
    %81 = arith.mulf %80, %80 : vector<8x256xf32>
    %cst_23 = arith.constant dense<0.000000e+00> : vector<8xf32>
    %82 = vector.multi_reduction <add>, %81, %cst_23 [1] : vector<8x256xf32> to vector<8xf32>
    %83 = vector.shape_cast %82 : vector<8xf32> to vector<8x1xf32>
    %cst_24 = arith.constant 2.560000e+02 : f32
    %84 = vector.broadcast %cst_24 : f32 to vector<8x1xf32>
    %85 = arith.divf %83, %84 : vector<8x1xf32>
    %cst_25 = arith.constant 9.99999974E-6 : f32
    %86 = vector.broadcast %cst_25 : f32 to vector<8x1xf32>
    %87 = arith.addf %85, %86 : vector<8x1xf32>
    %88 = math.rsqrt %87 : vector<8x1xf32>
    %cst_26 = arith.constant 1.000000e+00 : f32
    %89 = vector.broadcast %cst_26 : f32 to vector<8x1xf32>
    %90 = arith.select %74, %88, %89 : vector<8x1xi1>, vector<8x1xf32>
    %c0_27 = arith.constant 0 : index
    %c0_28 = arith.constant 0 : index
    %91 = vector.load %arg4[%c0_27, %c0_28] : memref<8x1xf32, #tpu.memory_space<vmem>>, vector<8x1xf32>
    %92 = arith.mulf %91, %90 : vector<8x1xf32>
    %c0_29 = arith.constant 0 : index
    %c0_30 = arith.constant 0 : index
    %93 = vector.load %arg5[%c0_29, %c0_30] : memref<8x1xf32, #tpu.memory_space<vmem>>, vector<8x1xf32>
    %cst_31 = arith.constant 0.000000e+00 : f32
    %94 = vector.broadcast %cst_31 : f32 to vector<8x1xf32>
    %95 = arith.select %74, %78, %94 : vector<8x1xi1>, vector<8x1xf32>
    %96 = arith.mulf %95, %92 : vector<8x1xf32>
    %97 = arith.subf %93, %96 : vector<8x1xf32>
    %98 = vector.broadcast %92 : vector<8x1xf32> to vector<8x256xf32>
    %99 = arith.mulf %71, %98 : vector<8x256xf32>
    %100 = vector.broadcast %97 : vector<8x1xf32> to vector<8x256xf32>
    %101 = arith.addf %99, %100 : vector<8x256xf32>
    %cst_32 = arith.constant 0.000000e+00 : f32
    %102 = vector.broadcast %cst_32 : f32 to vector<8x256xf32>
    %103 = arith.cmpf oge, %101, %102 : vector<8x256xf32>
    %cst_33 = arith.constant 2.000000e-01 : f32
    %104 = vector.broadcast %cst_33 : f32 to vector<8x256xf32>
    %105 = arith.mulf %104, %101 : vector<8x256xf32>
    %106 = arith.select %103, %101, %105 : vector<8x256xi1>, vector<8x256xf32>
    %cst_34 = arith.constant dense<0.000000e+00> : vector<8xf32>
    %107 = vector.multi_reduction <add>, %106, %cst_34 [1] : vector<8x256xf32> to vector<8xf32>
    %108 = vector.shape_cast %107 : vector<8xf32> to vector<8x1xf32>
    %cst_35 = arith.constant 2.560000e+02 : f32
    %109 = vector.broadcast %cst_35 : f32 to vector<8x1xf32>
    %110 = arith.divf %108, %109 : vector<8x1xf32>
    %111 = vector.broadcast %110 : vector<8x1xf32> to vector<8x256xf32>
    %112 = arith.subf %106, %111 : vector<8x256xf32>
    %113 = arith.mulf %112, %112 : vector<8x256xf32>
    %cst_36 = arith.constant dense<0.000000e+00> : vector<8xf32>
    %114 = vector.multi_reduction <add>, %113, %cst_36 [1] : vector<8x256xf32> to vector<8xf32>
    %115 = vector.shape_cast %114 : vector<8xf32> to vector<8x1xf32>
    %cst_37 = arith.constant 2.550000e+02 : f32
    %116 = vector.broadcast %cst_37 : f32 to vector<8x1xf32>
    %117 = arith.divf %115, %116 : vector<8x1xf32>
    %cst_38 = arith.constant 9.99999974E-5 : f32
    %118 = vector.broadcast %cst_38 : f32 to vector<8x1xf32>
    %119 = arith.addf %117, %118 : vector<8x1xf32>
    %cst_39 = arith.constant 4.000000e+00 : f32
    %120 = vector.broadcast %cst_39 : f32 to vector<8x1xf32>
    %121 = arith.mulf %120, %119 : vector<8x1xf32>
    %cst_40 = arith.constant 1.000000e+00 : f32
    %122 = vector.broadcast %cst_40 : f32 to vector<8x1xf32>
    %123 = arith.divf %122, %121 : vector<8x1xf32>
    %124 = vector.broadcast %123 : vector<8x1xf32> to vector<8x256xf32>
    %125 = arith.mulf %113, %124 : vector<8x256xf32>
    %cst_41 = arith.constant 5.000000e-01 : f32
    %126 = vector.broadcast %cst_41 : f32 to vector<8x256xf32>
    %127 = arith.addf %125, %126 : vector<8x256xf32>
    %cst_42 = arith.constant 0.000000e+00 : f32
    %128 = vector.broadcast %cst_42 : f32 to vector<8x256xf32>
    %129 = arith.subf %128, %127 : vector<8x256xf32>
    %130 = math.exp %129 : vector<8x256xf32>
    %cst_43 = arith.constant 1.000000e+00 : f32
    %131 = vector.broadcast %cst_43 : f32 to vector<8x256xf32>
    %132 = arith.addf %131, %130 : vector<8x256xf32>
    %cst_44 = arith.constant 1.000000e+00 : f32
    %133 = vector.broadcast %cst_44 : f32 to vector<8x256xf32>
    %134 = arith.divf %133, %132 : vector<8x256xf32>
    %135 = arith.mulf %106, %134 : vector<8x256xf32>
    %c0_45 = arith.constant 0 : index
    %c0_46 = arith.constant 0 : index
    %136 = vector.load %arg7[%c0_45, %c0_46] : memref<8x1xf32, #tpu.memory_space<vmem>>, vector<8x1xf32>
    %cst_47 = arith.constant 0.000000e+00 : f32
    %137 = vector.broadcast %cst_47 : f32 to vector<8x17xf32>
    %138 = tpu.concatenate %137, %135, %137 in 1 : vector<8x17xf32>, vector<8x256xf32>, vector<8x17xf32> -> vector<8x290xf32>
    %139 = vector.extract_strided_slice %138 {offsets = [0, 0], sizes = [8, 256], strides = [1, 1]} : vector<8x290xf32> to vector<8x256xf32>
    %c0_i32_48 = arith.constant 0 : i32
    %140 = vector.broadcast %c0_i32_48 : i32 to vector<1x256xi32>
    %141 = arith.cmpi ne, %16, %140 : vector<1x256xi32>
    %cst_49 = arith.constant 0.000000e+00 : f32
    %142 = vector.shape_cast %141 : vector<1x256xi1> to vector<1x256xi1>
    %143 = vector.broadcast %142 : vector<1x256xi1> to vector<8x256xi1>
    %144 = vector.broadcast %cst_49 : f32 to vector<8x256xf32>
    %145 = arith.select %143, %139, %144 : vector<8x256xi1>, vector<8x256xf32>
    %146 = vector.extract_strided_slice %138 {offsets = [0, 1], sizes = [8, 256], strides = [1, 1]} : vector<8x290xf32> to vector<8x256xf32>
    %147 = vector.extract_strided_slice %138 {offsets = [0, 2], sizes = [8, 256], strides = [1, 1]} : vector<8x290xf32> to vector<8x256xf32>
    %c15_i32_50 = arith.constant 15 : i32
    %148 = vector.broadcast %c15_i32_50 : i32 to vector<1x256xi32>
    %149 = arith.cmpi ne, %16, %148 : vector<1x256xi32>
    %cst_51 = arith.constant 0.000000e+00 : f32
    %150 = vector.shape_cast %149 : vector<1x256xi1> to vector<1x256xi1>
    %151 = vector.broadcast %150 : vector<1x256xi1> to vector<8x256xi1>
    %152 = vector.broadcast %cst_51 : f32 to vector<8x256xf32>
    %153 = arith.select %151, %147, %152 : vector<8x256xi1>, vector<8x256xf32>
    %154 = vector.extract_strided_slice %138 {offsets = [0, 16], sizes = [8, 256], strides = [1, 1]} : vector<8x290xf32> to vector<8x256xf32>
    %c0_i32_52 = arith.constant 0 : i32
    %155 = vector.broadcast %c0_i32_52 : i32 to vector<1x256xi32>
    %156 = arith.cmpi ne, %16, %155 : vector<1x256xi32>
    %cst_53 = arith.constant 0.000000e+00 : f32
    %157 = vector.shape_cast %156 : vector<1x256xi1> to vector<1x256xi1>
    %158 = vector.broadcast %157 : vector<1x256xi1> to vector<8x256xi1>
    %159 = vector.broadcast %cst_53 : f32 to vector<8x256xf32>
    %160 = arith.select %158, %154, %159 : vector<8x256xi1>, vector<8x256xf32>
    %161 = vector.extract_strided_slice %138 {offsets = [0, 17], sizes = [8, 256], strides = [1, 1]} : vector<8x290xf32> to vector<8x256xf32>
    %162 = vector.extract_strided_slice %138 {offsets = [0, 18], sizes = [8, 256], strides = [1, 1]} : vector<8x290xf32> to vector<8x256xf32>
    %c15_i32_54 = arith.constant 15 : i32
    %163 = vector.broadcast %c15_i32_54 : i32 to vector<1x256xi32>
    %164 = arith.cmpi ne, %16, %163 : vector<1x256xi32>
    %cst_55 = arith.constant 0.000000e+00 : f32
    %165 = vector.shape_cast %164 : vector<1x256xi1> to vector<1x256xi1>
    %166 = vector.broadcast %165 : vector<1x256xi1> to vector<8x256xi1>
    %167 = vector.broadcast %cst_55 : f32 to vector<8x256xf32>
    %168 = arith.select %166, %162, %167 : vector<8x256xi1>, vector<8x256xf32>
    %169 = vector.extract_strided_slice %138 {offsets = [0, 32], sizes = [8, 256], strides = [1, 1]} : vector<8x290xf32> to vector<8x256xf32>
    %c0_i32_56 = arith.constant 0 : i32
    %170 = vector.broadcast %c0_i32_56 : i32 to vector<1x256xi32>
    %171 = arith.cmpi ne, %16, %170 : vector<1x256xi32>
    %cst_57 = arith.constant 0.000000e+00 : f32
    %172 = vector.shape_cast %171 : vector<1x256xi1> to vector<1x256xi1>
    %173 = vector.broadcast %172 : vector<1x256xi1> to vector<8x256xi1>
    %174 = vector.broadcast %cst_57 : f32 to vector<8x256xf32>
    %175 = arith.select %173, %169, %174 : vector<8x256xi1>, vector<8x256xf32>
    %176 = vector.extract_strided_slice %138 {offsets = [0, 33], sizes = [8, 256], strides = [1, 1]} : vector<8x290xf32> to vector<8x256xf32>
    %177 = vector.extract_strided_slice %138 {offsets = [0, 34], sizes = [8, 256], strides = [1, 1]} : vector<8x290xf32> to vector<8x256xf32>
    %c15_i32_58 = arith.constant 15 : i32
    %178 = vector.broadcast %c15_i32_58 : i32 to vector<1x256xi32>
    %179 = arith.cmpi ne, %16, %178 : vector<1x256xi32>
    %cst_59 = arith.constant 0.000000e+00 : f32
    %180 = vector.shape_cast %179 : vector<1x256xi1> to vector<1x256xi1>
    %181 = vector.broadcast %180 : vector<1x256xi1> to vector<8x256xi1>
    %182 = vector.broadcast %cst_59 : f32 to vector<8x256xf32>
    %183 = arith.select %181, %177, %182 : vector<8x256xi1>, vector<8x256xf32>
    %184 = tpu.concatenate %145, %146, %153, %160, %161, %168, %175, %176, %183 in 0 : vector<8x256xf32>, vector<8x256xf32>, vector<8x256xf32>, vector<8x256xf32>, vector<8x256xf32>, vector<8x256xf32>, vector<8x256xf32>, vector<8x256xf32>, vector<8x256xf32> -> vector<72x256xf32>
    %c0_60 = arith.constant 0 : index
    %c0_61 = arith.constant 0 : index
    %185 = vector.load %arg6[%c0_60, %c0_61] : memref<8x72xf32, #tpu.memory_space<vmem>>, vector<8x72xf32>
    %cst_62 = arith.constant dense<0.000000e+00> : vector<8x256xf32>
    %186 = tpu.matmul %185, %184, %cst_62 {dimension_numbers = #tpu.dot_dimension_numbers<[1], [0], [0], [1], [0, 0, 1, 1], [], []>} : vector<8x72xf32>, vector<72x256xf32>, vector<8x256xf32> -> vector<8x256xf32>
    %187 = vector.broadcast %136 : vector<8x1xf32> to vector<8x256xf32>
    %188 = arith.addf %186, %187 : vector<8x256xf32>
    %c0_63 = arith.constant 0 : index
    %c0_64 = arith.constant 0 : index
    %189 = vector.load %arg8[%c0_63, %c0_64] : memref<8x8xf32, #tpu.memory_space<vmem>>, vector<8x8xf32>
    %cst_65 = arith.constant dense<0.000000e+00> : vector<8x256xf32>
    %190 = tpu.matmul %189, %18, %cst_65 {dimension_numbers = #tpu.dot_dimension_numbers<[1], [0], [0], [1], [0, 0, 1, 1], [], []>} : vector<8x8xf32>, vector<8x256xf32>, vector<8x256xf32> -> vector<8x256xf32>
    %c0_66 = arith.constant 0 : index
    %c0_67 = arith.constant 0 : index
    %191 = vector.load %arg9[%c0_66, %c0_67] : memref<8x1xf32, #tpu.memory_space<vmem>>, vector<8x1xf32>
    %192 = vector.broadcast %191 : vector<8x1xf32> to vector<8x256xf32>
    %193 = arith.addf %190, %192 : vector<8x256xf32>
    %194 = tpu.concatenate %188, %193 in 0 : vector<8x256xf32>, vector<8x256xf32> -> vector<16x256xf32>
    %c0_68 = arith.constant 0 : index
    %c0_69 = arith.constant 0 : index
    %195 = vector.load %arg11[%c0_68, %c0_69] : memref<8x1xf32, #tpu.memory_space<vmem>>, vector<8x1xf32>
    %cst_70 = arith.constant 0.000000e+00 : f32
    %196 = vector.broadcast %cst_70 : f32 to vector<16x17xf32>
    %197 = tpu.concatenate %196, %194, %196 in 1 : vector<16x17xf32>, vector<16x256xf32>, vector<16x17xf32> -> vector<16x290xf32>
    %198 = vector.extract_strided_slice %197 {offsets = [0, 0], sizes = [16, 256], strides = [1, 1]} : vector<16x290xf32> to vector<16x256xf32>
    %c0_i32_71 = arith.constant 0 : i32
    %199 = vector.broadcast %c0_i32_71 : i32 to vector<1x256xi32>
    %200 = arith.cmpi ne, %16, %199 : vector<1x256xi32>
    %cst_72 = arith.constant 0.000000e+00 : f32
    %201 = vector.shape_cast %200 : vector<1x256xi1> to vector<1x256xi1>
    %202 = vector.broadcast %201 : vector<1x256xi1> to vector<16x256xi1>
    %203 = vector.broadcast %cst_72 : f32 to vector<16x256xf32>
    %204 = arith.select %202, %198, %203 : vector<16x256xi1>, vector<16x256xf32>
    %205 = vector.extract_strided_slice %197 {offsets = [0, 1], sizes = [16, 256], strides = [1, 1]} : vector<16x290xf32> to vector<16x256xf32>
    %206 = vector.extract_strided_slice %197 {offsets = [0, 2], sizes = [16, 256], strides = [1, 1]} : vector<16x290xf32> to vector<16x256xf32>
    %c15_i32_73 = arith.constant 15 : i32
    %207 = vector.broadcast %c15_i32_73 : i32 to vector<1x256xi32>
    %208 = arith.cmpi ne, %16, %207 : vector<1x256xi32>
    %cst_74 = arith.constant 0.000000e+00 : f32
    %209 = vector.shape_cast %208 : vector<1x256xi1> to vector<1x256xi1>
    %210 = vector.broadcast %209 : vector<1x256xi1> to vector<16x256xi1>
    %211 = vector.broadcast %cst_74 : f32 to vector<16x256xf32>
    %212 = arith.select %210, %206, %211 : vector<16x256xi1>, vector<16x256xf32>
    %213 = vector.extract_strided_slice %197 {offsets = [0, 16], sizes = [16, 256], strides = [1, 1]} : vector<16x290xf32> to vector<16x256xf32>
    %c0_i32_75 = arith.constant 0 : i32
    %214 = vector.broadcast %c0_i32_75 : i32 to vector<1x256xi32>
    %215 = arith.cmpi ne, %16, %214 : vector<1x256xi32>
    %cst_76 = arith.constant 0.000000e+00 : f32
    %216 = vector.shape_cast %215 : vector<1x256xi1> to vector<1x256xi1>
    %217 = vector.broadcast %216 : vector<1x256xi1> to vector<16x256xi1>
    %218 = vector.broadcast %cst_76 : f32 to vector<16x256xf32>
    %219 = arith.select %217, %213, %218 : vector<16x256xi1>, vector<16x256xf32>
    %220 = vector.extract_strided_slice %197 {offsets = [0, 17], sizes = [16, 256], strides = [1, 1]} : vector<16x290xf32> to vector<16x256xf32>
    %221 = vector.extract_strided_slice %197 {offsets = [0, 18], sizes = [16, 256], strides = [1, 1]} : vector<16x290xf32> to vector<16x256xf32>
    %c15_i32_77 = arith.constant 15 : i32
    %222 = vector.broadcast %c15_i32_77 : i32 to vector<1x256xi32>
    %223 = arith.cmpi ne, %16, %222 : vector<1x256xi32>
    %cst_78 = arith.constant 0.000000e+00 : f32
    %224 = vector.shape_cast %223 : vector<1x256xi1> to vector<1x256xi1>
    %225 = vector.broadcast %224 : vector<1x256xi1> to vector<16x256xi1>
    %226 = vector.broadcast %cst_78 : f32 to vector<16x256xf32>
    %227 = arith.select %225, %221, %226 : vector<16x256xi1>, vector<16x256xf32>
    %228 = vector.extract_strided_slice %197 {offsets = [0, 32], sizes = [16, 256], strides = [1, 1]} : vector<16x290xf32> to vector<16x256xf32>
    %c0_i32_79 = arith.constant 0 : i32
    %229 = vector.broadcast %c0_i32_79 : i32 to vector<1x256xi32>
    %230 = arith.cmpi ne, %16, %229 : vector<1x256xi32>
    %cst_80 = arith.constant 0.000000e+00 : f32
    %231 = vector.shape_cast %230 : vector<1x256xi1> to vector<1x256xi1>
    %232 = vector.broadcast %231 : vector<1x256xi1> to vector<16x256xi1>
    %233 = vector.broadcast %cst_80 : f32 to vector<16x256xf32>
    %234 = arith.select %232, %228, %233 : vector<16x256xi1>, vector<16x256xf32>
    %235 = vector.extract_strided_slice %197 {offsets = [0, 33], sizes = [16, 256], strides = [1, 1]} : vector<16x290xf32> to vector<16x256xf32>
    %236 = vector.extract_strided_slice %197 {offsets = [0, 34], sizes = [16, 256], strides = [1, 1]} : vector<16x290xf32> to vector<16x256xf32>
    %c15_i32_81 = arith.constant 15 : i32
    %237 = vector.broadcast %c15_i32_81 : i32 to vector<1x256xi32>
    %238 = arith.cmpi ne, %16, %237 : vector<1x256xi32>
    %cst_82 = arith.constant 0.000000e+00 : f32
    %239 = vector.shape_cast %238 : vector<1x256xi1> to vector<1x256xi1>
    %240 = vector.broadcast %239 : vector<1x256xi1> to vector<16x256xi1>
    %241 = vector.broadcast %cst_82 : f32 to vector<16x256xf32>
    %242 = arith.select %240, %236, %241 : vector<16x256xi1>, vector<16x256xf32>
    %243 = tpu.concatenate %204, %205, %212, %219, %220, %227, %234, %235, %242 in 0 : vector<16x256xf32>, vector<16x256xf32>, vector<16x256xf32>, vector<16x256xf32>, vector<16x256xf32>, vector<16x256xf32>, vector<16x256xf32>, vector<16x256xf32>, vector<16x256xf32> -> vector<144x256xf32>
    %c0_83 = arith.constant 0 : index
    %c0_84 = arith.constant 0 : index
    %244 = vector.load %arg10[%c0_83, %c0_84] : memref<8x144xf32, #tpu.memory_space<vmem>>, vector<8x144xf32>
    %cst_85 = arith.constant dense<0.000000e+00> : vector<8x256xf32>
    %245 = tpu.matmul %244, %243, %cst_85 {dimension_numbers = #tpu.dot_dimension_numbers<[1], [0], [0], [1], [0, 0, 1, 1], [], []>} : vector<8x144xf32>, vector<144x256xf32>, vector<8x256xf32> -> vector<8x256xf32>
    %246 = vector.broadcast %195 : vector<8x1xf32> to vector<8x256xf32>
    %247 = arith.addf %245, %246 : vector<8x256xf32>
    %cst_86 = arith.constant 0.000000e+00 : f32
    %248 = vector.broadcast %cst_86 : f32 to vector<8x256xf32>
    %249 = arith.cmpf oge, %247, %248 : vector<8x256xf32>
    %cst_87 = arith.constant 2.000000e-01 : f32
    %250 = vector.broadcast %cst_87 : f32 to vector<8x256xf32>
    %251 = arith.mulf %250, %247 : vector<8x256xf32>
    %252 = arith.select %249, %247, %251 : vector<8x256xi1>, vector<8x256xf32>
    %c0_88 = arith.constant 0 : index
    %c0_89 = arith.constant 0 : index
    %253 = vector.load %arg13[%c0_88, %c0_89] : memref<8x1xf32, #tpu.memory_space<vmem>>, vector<8x1xf32>
    %cst_90 = arith.constant 0.000000e+00 : f32
    %254 = vector.broadcast %cst_90 : f32 to vector<8x17xf32>
    %255 = tpu.concatenate %254, %252, %254 in 1 : vector<8x17xf32>, vector<8x256xf32>, vector<8x17xf32> -> vector<8x290xf32>
    %256 = vector.extract_strided_slice %255 {offsets = [0, 0], sizes = [8, 256], strides = [1, 1]} : vector<8x290xf32> to vector<8x256xf32>
    %c0_i32_91 = arith.constant 0 : i32
    %257 = vector.broadcast %c0_i32_91 : i32 to vector<1x256xi32>
    %258 = arith.cmpi ne, %16, %257 : vector<1x256xi32>
    %cst_92 = arith.constant 0.000000e+00 : f32
    %259 = vector.shape_cast %258 : vector<1x256xi1> to vector<1x256xi1>
    %260 = vector.broadcast %259 : vector<1x256xi1> to vector<8x256xi1>
    %261 = vector.broadcast %cst_92 : f32 to vector<8x256xf32>
    %262 = arith.select %260, %256, %261 : vector<8x256xi1>, vector<8x256xf32>
    %263 = vector.extract_strided_slice %255 {offsets = [0, 1], sizes = [8, 256], strides = [1, 1]} : vector<8x290xf32> to vector<8x256xf32>
    %264 = vector.extract_strided_slice %255 {offsets = [0, 2], sizes = [8, 256], strides = [1, 1]} : vector<8x290xf32> to vector<8x256xf32>
    %c15_i32_93 = arith.constant 15 : i32
    %265 = vector.broadcast %c15_i32_93 : i32 to vector<1x256xi32>
    %266 = arith.cmpi ne, %16, %265 : vector<1x256xi32>
    %cst_94 = arith.constant 0.000000e+00 : f32
    %267 = vector.shape_cast %266 : vector<1x256xi1> to vector<1x256xi1>
    %268 = vector.broadcast %267 : vector<1x256xi1> to vector<8x256xi1>
    %269 = vector.broadcast %cst_94 : f32 to vector<8x256xf32>
    %270 = arith.select %268, %264, %269 : vector<8x256xi1>, vector<8x256xf32>
    %271 = vector.extract_strided_slice %255 {offsets = [0, 16], sizes = [8, 256], strides = [1, 1]} : vector<8x290xf32> to vector<8x256xf32>
    %c0_i32_95 = arith.constant 0 : i32
    %272 = vector.broadcast %c0_i32_95 : i32 to vector<1x256xi32>
    %273 = arith.cmpi ne, %16, %272 : vector<1x256xi32>
    %cst_96 = arith.constant 0.000000e+00 : f32
    %274 = vector.shape_cast %273 : vector<1x256xi1> to vector<1x256xi1>
    %275 = vector.broadcast %274 : vector<1x256xi1> to vector<8x256xi1>
    %276 = vector.broadcast %cst_96 : f32 to vector<8x256xf32>
    %277 = arith.select %275, %271, %276 : vector<8x256xi1>, vector<8x256xf32>
    %278 = vector.extract_strided_slice %255 {offsets = [0, 17], sizes = [8, 256], strides = [1, 1]} : vector<8x290xf32> to vector<8x256xf32>
    %279 = vector.extract_strided_slice %255 {offsets = [0, 18], sizes = [8, 256], strides = [1, 1]} : vector<8x290xf32> to vector<8x256xf32>
    %c15_i32_97 = arith.constant 15 : i32
    %280 = vector.broadcast %c15_i32_97 : i32 to vector<1x256xi32>
    %281 = arith.cmpi ne, %16, %280 : vector<1x256xi32>
    %cst_98 = arith.constant 0.000000e+00 : f32
    %282 = vector.shape_cast %281 : vector<1x256xi1> to vector<1x256xi1>
    %283 = vector.broadcast %282 : vector<1x256xi1> to vector<8x256xi1>
    %284 = vector.broadcast %cst_98 : f32 to vector<8x256xf32>
    %285 = arith.select %283, %279, %284 : vector<8x256xi1>, vector<8x256xf32>
    %286 = vector.extract_strided_slice %255 {offsets = [0, 32], sizes = [8, 256], strides = [1, 1]} : vector<8x290xf32> to vector<8x256xf32>
    %c0_i32_99 = arith.constant 0 : i32
    %287 = vector.broadcast %c0_i32_99 : i32 to vector<1x256xi32>
    %288 = arith.cmpi ne, %16, %287 : vector<1x256xi32>
    %cst_100 = arith.constant 0.000000e+00 : f32
    %289 = vector.shape_cast %288 : vector<1x256xi1> to vector<1x256xi1>
    %290 = vector.broadcast %289 : vector<1x256xi1> to vector<8x256xi1>
    %291 = vector.broadcast %cst_100 : f32 to vector<8x256xf32>
    %292 = arith.select %290, %286, %291 : vector<8x256xi1>, vector<8x256xf32>
    %293 = vector.extract_strided_slice %255 {offsets = [0, 33], sizes = [8, 256], strides = [1, 1]} : vector<8x290xf32> to vector<8x256xf32>
    %294 = vector.extract_strided_slice %255 {offsets = [0, 34], sizes = [8, 256], strides = [1, 1]} : vector<8x290xf32> to vector<8x256xf32>
    %c15_i32_101 = arith.constant 15 : i32
    %295 = vector.broadcast %c15_i32_101 : i32 to vector<1x256xi32>
    %296 = arith.cmpi ne, %16, %295 : vector<1x256xi32>
    %cst_102 = arith.constant 0.000000e+00 : f32
    %297 = vector.shape_cast %296 : vector<1x256xi1> to vector<1x256xi1>
    %298 = vector.broadcast %297 : vector<1x256xi1> to vector<8x256xi1>
    %299 = vector.broadcast %cst_102 : f32 to vector<8x256xf32>
    %300 = arith.select %298, %294, %299 : vector<8x256xi1>, vector<8x256xf32>
    %301 = tpu.concatenate %262, %263, %270, %277, %278, %285, %292, %293, %300 in 0 : vector<8x256xf32>, vector<8x256xf32>, vector<8x256xf32>, vector<8x256xf32>, vector<8x256xf32>, vector<8x256xf32>, vector<8x256xf32>, vector<8x256xf32>, vector<8x256xf32> -> vector<72x256xf32>
    %c0_103 = arith.constant 0 : index
    %c0_104 = arith.constant 0 : index
    %302 = vector.load %arg12[%c0_103, %c0_104] : memref<8x72xf32, #tpu.memory_space<vmem>>, vector<8x72xf32>
    %cst_105 = arith.constant dense<0.000000e+00> : vector<8x256xf32>
    %303 = tpu.matmul %302, %301, %cst_105 {dimension_numbers = #tpu.dot_dimension_numbers<[1], [0], [0], [1], [0, 0, 1, 1], [], []>} : vector<8x72xf32>, vector<72x256xf32>, vector<8x256xf32> -> vector<8x256xf32>
    %304 = vector.broadcast %253 : vector<8x1xf32> to vector<8x256xf32>
    %305 = arith.addf %303, %304 : vector<8x256xf32>
    %cst_106 = arith.constant 0.000000e+00 : f32
    %306 = vector.broadcast %cst_106 : f32 to vector<8x256xf32>
    %307 = arith.cmpf oge, %305, %306 : vector<8x256xf32>
    %cst_107 = arith.constant 2.000000e-01 : f32
    %308 = vector.broadcast %cst_107 : f32 to vector<8x256xf32>
    %309 = arith.mulf %308, %305 : vector<8x256xf32>
    %310 = arith.select %307, %305, %309 : vector<8x256xi1>, vector<8x256xf32>
    %c0_108 = arith.constant 0 : index
    %c0_109 = arith.constant 0 : index
    %c0_110 = arith.constant 0 : index
    %311 = vector.load %arg14[%c0_108, %c0_109, %c0_110] : memref<1x8x256xf32, #tpu.memory_space<vmem>>, vector<1x8x256xf32>
    %312 = vector.shape_cast %311 : vector<1x8x256xf32> to vector<8x256xf32>
    %313 = vector.shape_cast %310 : vector<8x256xf32> to vector<1x8x256xf32>
    tpu.vector_store %arg14[%c0_108, %c0_109, %c0_110], %313 {strides = array<i32>} : memref<1x8x256xf32, #tpu.memory_space<vmem>>, vector<1x8x256xf32>,
    return
  }
  func.func @transform_0(%arg0: i32) -> (i32, i32, i32) {
    %c0_i32 = arith.constant 0 : i32
    %c0_i32_0 = arith.constant 0 : i32
    %c0_i32_1 = arith.constant 0 : i32
    return %arg0, %c0_i32, %c0_i32_0 : i32, i32, i32
  }
  func.func @transform_1(%arg0: i32) -> (i32, i32) {
    %c0_i32 = arith.constant 0 : i32
    %c0_i32_0 = arith.constant 0 : i32
    %c0_i32_1 = arith.constant 0 : i32
    return %c0_i32, %c0_i32_0 : i32, i32
  }
  func.func @transform_2(%arg0: i32) -> (i32, i32) {
    %c0_i32 = arith.constant 0 : i32
    %c0_i32_0 = arith.constant 0 : i32
    %c0_i32_1 = arith.constant 0 : i32
    return %c0_i32, %c0_i32_0 : i32, i32
  }
  func.func @transform_3(%arg0: i32) -> (i32, i32) {
    %c0_i32 = arith.constant 0 : i32
    %c0_i32_0 = arith.constant 0 : i32
    %c0_i32_1 = arith.constant 0 : i32
    return %c0_i32, %c0_i32_0 : i32, i32
  }
  func.func @transform_4(%arg0: i32) -> (i32, i32) {
    %c0_i32 = arith.constant 0 : i32
    %c0_i32_0 = arith.constant 0 : i32
    %c0_i32_1 = arith.constant 0 : i32
    return %c0_i32, %c0_i32_0 : i32, i32
  }
  func.func @transform_5(%arg0: i32) -> (i32, i32) {
    %c0_i32 = arith.constant 0 : i32
    %c0_i32_0 = arith.constant 0 : i32
    %c0_i32_1 = arith.constant 0 : i32
    return %c0_i32, %c0_i32_0 : i32, i32
  }
  func.func @transform_6(%arg0: i32) -> (i32, i32) {
    %c0_i32 = arith.constant 0 : i32
    %c0_i32_0 = arith.constant 0 : i32
    %c0_i32_1 = arith.constant 0 : i32
    return %c0_i32, %c0_i32_0 : i32, i32
  }
  func.func @transform_7(%arg0: i32) -> (i32, i32) {
    %c0_i32 = arith.constant 0 : i32
    %c0_i32_0 = arith.constant 0 : i32
    %c0_i32_1 = arith.constant 0 : i32
    return %c0_i32, %c0_i32_0 : i32, i32
  }
  func.func @transform_8(%arg0: i32) -> (i32, i32) {
    %c0_i32 = arith.constant 0 : i32
    %c0_i32_0 = arith.constant 0 : i32
    %c0_i32_1 = arith.constant 0 : i32
    return %c0_i32, %c0_i32_0 : i32, i32
  }
  func.func @transform_9(%arg0: i32) -> (i32, i32) {
    %c0_i32 = arith.constant 0 : i32
    %c0_i32_0 = arith.constant 0 : i32
    %c0_i32_1 = arith.constant 0 : i32
    return %c0_i32, %c0_i32_0 : i32, i32
  }
  func.func @transform_10(%arg0: i32) -> (i32, i32) {
    %c0_i32 = arith.constant 0 : i32
    %c0_i32_0 = arith.constant 0 : i32
    %c0_i32_1 = arith.constant 0 : i32
    return %c0_i32, %c0_i32_0 : i32, i32
  }
  func.func @transform_11(%arg0: i32) -> (i32, i32) {
    %c0_i32 = arith.constant 0 : i32
    %c0_i32_0 = arith.constant 0 : i32
    %c0_i32_1 = arith.constant 0 : i32
    return %c0_i32, %c0_i32_0 : i32, i32
  }
  func.func @transform_12(%arg0: i32) -> (i32, i32) {
    %c0_i32 = arith.constant 0 : i32
    %c0_i32_0 = arith.constant 0 : i32
    %c0_i32_1 = arith.constant 0 : i32
    return %c0_i32, %c0_i32_0 : i32, i32
  }
  func.func @transform_13(%arg0: i32) -> (i32, i32, i32) {
    %c0_i32 = arith.constant 0 : i32
    %c0_i32_0 = arith.constant 0 : i32
    %c0_i32_1 = arith.constant 0 : i32
    return %arg0, %c0_i32, %c0_i32_0 : i32, i32, i32
  }
}

</mosaic_0001>

<llo_original>
// kernel: tpu_custom_call.1
$region0: #{tpu_custom_call.1}
  #allocation0 [shape = 'u32[]', space=smem, size = 0x4, offset = 0x4, fixed_abs, tag = 'smem constant byte address 0x4 - core index']
  #allocation1 [shape = 'u32[144,128]{1,0:T(1,128)}', space=vmem, size = 0x12000, scoped, tag = 'internal scratch']
  %s0 = inlined_call_operand.vmem [shape: f32[2,8,256], index: 0, kind: input, shape index: {}]
  %s1 = inlined_call_operand.vmem [shape: f32[8,72], index: 1, kind: input, shape index: {}]
  %s2 = inlined_call_operand.vmem [shape: f32[8,1], index: 2, kind: input, shape index: {}]
  %s3 = inlined_call_operand.vmem [shape: f32[8,1], index: 3, kind: input, shape index: {}]
  %s4 = inlined_call_operand.vmem [shape: f32[8,1], index: 4, kind: input, shape index: {}]
  %s5 = inlined_call_operand.vmem [shape: f32[8,72], index: 5, kind: input, shape index: {}]
  %s6 = inlined_call_operand.vmem [shape: f32[8,1], index: 6, kind: input, shape index: {}]
  %s7 = inlined_call_operand.vmem [shape: f32[8,8], index: 7, kind: input, shape index: {}]
  %s8 = inlined_call_operand.vmem [shape: f32[8,1], index: 8, kind: input, shape index: {}]
  %s9 = inlined_call_operand.vmem [shape: f32[8,144], index: 9, kind: input, shape index: {}]
  %s10 = inlined_call_operand.vmem [shape: f32[8,1], index: 10, kind: input, shape index: {}]
  %s11 = inlined_call_operand.vmem [shape: f32[8,72], index: 11, kind: input, shape index: {}]
  %s12 = inlined_call_operand.vmem [shape: f32[8,1], index: 12, kind: input, shape index: {}]
  %s13 = inlined_call_operand.hbm [shape: f32[2,8,256], index: 13, kind: output, shape index: {}]
  %s14 = sld [smem:[#allocation0]]
  $region85: #{tpu_custom_call.1} parent=0
    _
  %s16 = ssub.s32 1, %s14
  %s17 = scalar_select 0, %s16, %s14
  $region1: #{tpu_custom_call.1} parent=0
    #allocation2 [shape = 'u8[16384]{0}', space=vmem, size = 0x4000, scoped, tag = 'output window, operand 0']
    #allocation3 [shape = 's32[2]{0}', space=sflag, size = 0x8, scoped, tag = 'scoped memory for tpu_custom_call.1']
    %18 = vsyncpa [#allocation3], 0
    %s19 = scalar_lea.sflag [#allocation3], 1
    %20 = vsyncpa %s19, 0
    loop: start=0, step=1, limit=4
    $region2: #{tpu_custom_call.1} parent=1 // loop_pre_header
      _
    $region3: #{tpu_custom_call.1} parent=1 // loop_header
      %s22 = sphi 0, %s26
      %p23 = scmp.ge.s32.totalorder %s22, 4
      %s32 = sphi 0, %s34
      %s35 = sphi 0, %s32
      %s36 = sphi 0, %s35
      %s52 = sphi 0, %s36
      %s56 = sphi 0, %s56
      %s58 = sphi 0, %s56
      %s59 = sphi 0, %s58
      %s73 = sphi 0, %s59
      %s77 = sphi 0, %s77
      %s79 = sphi 0, %s77
      %s80 = sphi 0, %s79
      %s94 = sphi 0, %s80
      %s98 = sphi 0, %s98
      %s100 = sphi 0, %s98
      %s101 = sphi 0, %s100
      %s115 = sphi 0, %s101
      %s119 = sphi 0, %s119
      %s121 = sphi 0, %s119
      %s122 = sphi 0, %s121
      %s136 = sphi 0, %s122
      %s140 = sphi 0, %s140
      %s142 = sphi 0, %s140
      %s143 = sphi 0, %s142
      %s157 = sphi 0, %s143
      %s161 = sphi 0, %s161
      %s163 = sphi 0, %s161
      %s164 = sphi 0, %s163
      %s178 = sphi 0, %s164
      %s182 = sphi 0, %s182
      %s184 = sphi 0, %s182
      %s185 = sphi 0, %s184
      %s199 = sphi 0, %s185
      %s203 = sphi 0, %s203
      %s205 = sphi 0, %s203
      %s206 = sphi 0, %s205
      %s220 = sphi 0, %s206
      %s224 = sphi 0, %s224
      %s226 = sphi 0, %s224
      %s227 = sphi 0, %s226
      %s241 = sphi 0, %s227
      %s245 = sphi 0, %s245
      %s247 = sphi 0, %s245
      %s248 = sphi 0, %s247
      %s262 = sphi 0, %s248
      %s266 = sphi 0, %s266
      %s268 = sphi 0, %s266
      %s269 = sphi 0, %s268
      %s283 = sphi 0, %s269
      %s287 = sphi 0, %s287
      %s289 = sphi 0, %s287
      %s290 = sphi 0, %s289
      %s304 = sphi 0, %s290
      %s310 = sphi 0, %s312
      %s313 = sphi 0, %s310
      %s314 = sphi 0, %s313
      %s330 = sphi 0, %s314
    $region4: #{tpu_custom_call.1} parent=1 // loop_header_branch
      %25 = sbr.rel (%p23) target = $region8
    $region5: #{tpu_custom_call.1} parent=1 // loop_body
      %s27 = ssub.s32 %s22, 1
      %s28 = ssub.s32 %s22, 2
      %s29 = sadd.s32 %s22, 1
      %s30 = ssub.s32 %s22, %s29
      %p31 = scmp.eq.s32.totalorder %s30, 0
      %s33 = sadd.s32 %s32, 1
      %s34 = scalar_select %p31, %s32, %s33
      %p37 = pneg %p31
      %p38 = scmp.eq.s32.totalorder %s22, 1
      %p39 = por %p37, %p38
      %p40 = scmp.ne.s32.totalorder %s32, %s35
      %p41 = scmp.eq.s32.totalorder %s22, 0
      %p42 = por %p40, %p41
      %p43 = scmp.ne.s32.totalorder %s32, %s35
      %p44 = scmp.eq.s32.totalorder %s27, 1
      %p45 = por %p43, %p44
      %p46 = scmp.ne.s32.totalorder %s35, %s36
      %p47 = scmp.eq.s32.totalorder %s27, 0
      %p48 = por %p46, %p47
      %p49 = scmp.ne.s32.totalorder %s35, %s36
      %p50 = scmp.eq.s32.totalorder %s28, 1
      %p51 = por %p49, %p50
      %p53 = scmp.ne.s32.totalorder %s36, %s52
      %p54 = scmp.eq.s32.totalorder %s28, 0
      %p55 = por %p53, %p54
      %s57 = sadd.s32 %s56, 1
      %p60 = scmp.eq.s32.totalorder %s22, 1
      %p61 = scmp.ne.s32.totalorder %s56, %s58
      %p62 = scmp.eq.s32.totalorder %s22, 0
      %p63 = por %p61, %p62
      %p64 = scmp.ne.s32.totalorder %s56, %s58
      %p65 = scmp.eq.s32.totalorder %s27, 1
      %p66 = por %p64, %p65
      %p67 = scmp.ne.s32.totalorder %s58, %s59
      %p68 = scmp.eq.s32.totalorder %s27, 0
      %p69 = por %p67, %p68
      %p70 = scmp.ne.s32.totalorder %s58, %s59
      %p71 = scmp.eq.s32.totalorder %s28, 1
      %p72 = por %p70, %p71
      %p74 = scmp.ne.s32.totalorder %s59, %s73
      %p75 = scmp.eq.s32.totalorder %s28, 0
      %p76 = por %p74, %p75
      %s78 = sadd.s32 %s77, 1
      %p81 = scmp.eq.s32.totalorder %s22, 1
      %p82 = scmp.ne.s32.totalorder %s77, %s79
      %p83 = scmp.eq.s32.totalorder %s22, 0
      %p84 = por %p82, %p83
      %p85 = scmp.ne.s32.totalorder %s77, %s79
      %p86 = scmp.eq.s32.totalorder %s27, 1
      %p87 = por %p85, %p86
      %p88 = scmp.ne.s32.totalorder %s79, %s80
      %p89 = scmp.eq.s32.totalorder %s27, 0
      %p90 = por %p88, %p89
      %p91 = scmp.ne.s32.totalorder %s79, %s80
      %p92 = scmp.eq.s32.totalorder %s28, 1
      %p93 = por %p91, %p92
      %p95 = scmp.ne.s32.totalorder %s80, %s94
      %p96 = scmp.eq.s32.totalorder %s28, 0
      %p97 = por %p95, %p96
      %s99 = sadd.s32 %s98, 1
      %p102 = scmp.eq.s32.totalorder %s22, 1
      %p103 = scmp.ne.s32.totalorder %s98, %s100
      %p104 = scmp.eq.s32.totalorder %s22, 0
      %p105 = por %p103, %p104
      %p106 = scmp.ne.s32.totalorder %s98, %s100
      %p107 = scmp.eq.s32.totalorder %s27, 1
      %p108 = por %p106, %p107
      %p109 = scmp.ne.s32.totalorder %s100, %s101
      %p110 = scmp.eq.s32.totalorder %s27, 0
      %p111 = por %p109, %p110
      %p112 = scmp.ne.s32.totalorder %s100, %s101
      %p113 = scmp.eq.s32.totalorder %s28, 1
      %p114 = por %p112, %p113
      %p116 = scmp.ne.s32.totalorder %s101, %s115
      %p117 = scmp.eq.s32.totalorder %s28, 0
      %p118 = por %p116, %p117
      %s120 = sadd.s32 %s119, 1
      %p123 = scmp.eq.s32.totalorder %s22, 1
      %p124 = scmp.ne.s32.totalorder %s119, %s121
      %p125 = scmp.eq.s32.totalorder %s22, 0
      %p126 = por %p124, %p125
      %p127 = scmp.ne.s32.totalorder %s119, %s121
      %p128 = scmp.eq.s32.totalorder %s27, 1
      %p129 = por %p127, %p128
      %p130 = scmp.ne.s32.totalorder %s121, %s122
      %p131 = scmp.eq.s32.totalorder %s27, 0
      %p132 = por %p130, %p131
      %p133 = scmp.ne.s32.totalorder %s121, %s122
      %p134 = scmp.eq.s32.totalorder %s28, 1
      %p135 = por %p133, %p134
      %p137 = scmp.ne.s32.totalorder %s122, %s136
      %p138 = scmp.eq.s32.totalorder %s28, 0
      %p139 = por %p137, %p138
      %s141 = sadd.s32 %s140, 1
      %p144 = scmp.eq.s32.totalorder %s22, 1
      %p145 = scmp.ne.s32.totalorder %s140, %s142
      %p146 = scmp.eq.s32.totalorder %s22, 0
      %p147 = por %p145, %p146
      %p148 = scmp.ne.s32.totalorder %s140, %s142
      %p149 = scmp.eq.s32.totalorder %s27, 1
      %p150 = por %p148, %p149
      %p151 = scmp.ne.s32.totalorder %s142, %s143
      %p152 = scmp.eq.s32.totalorder %s27, 0
      %p153 = por %p151, %p152
      %p154 = scmp.ne.s32.totalorder %s142, %s143
      %p155 = scmp.eq.s32.totalorder %s28, 1
      %p156 = por %p154, %p155
      %p158 = scmp.ne.s32.totalorder %s143, %s157
      %p159 = scmp.eq.s32.totalorder %s28, 0
      %p160 = por %p158, %p159
      %s162 = sadd.s32 %s161, 1
      %p165 = scmp.eq.s32.totalorder %s22, 1
      %p166 = scmp.ne.s32.totalorder %s161, %s163
      %p167 = scmp.eq.s32.totalorder %s22, 0
      %p168 = por %p166, %p167
      %p169 = scmp.ne.s32.totalorder %s161, %s163
      %p170 = scmp.eq.s32.totalorder %s27, 1
      %p171 = por %p169, %p170
      %p172 = scmp.ne.s32.totalorder %s163, %s164
      %p173 = scmp.eq.s32.totalorder %s27, 0
      %p174 = por %p172, %p173
      %p175 = scmp.ne.s32.totalorder %s163, %s164
      %p176 = scmp.eq.s32.totalorder %s28, 1
      %p177 = por %p175, %p176
      %p179 = scmp.ne.s32.totalorder %s164, %s178
      %p180 = scmp.eq.s32.totalorder %s28, 0
      %p181 = por %p179, %p180
      %s183 = sadd.s32 %s182, 1
      %p186 = scmp.eq.s32.totalorder %s22, 1
      %p187 = scmp.ne.s32.totalorder %s182, %s184
      %p188 = scmp.eq.s32.totalorder %s22, 0
      %p189 = por %p187, %p188
      %p190 = scmp.ne.s32.totalorder %s182, %s184
      %p191 = scmp.eq.s32.totalorder %s27, 1
      %p192 = por %p190, %p191
      %p193 = scmp.ne.s32.totalorder %s184, %s185
      %p194 = scmp.eq.s32.totalorder %s27, 0
      %p195 = por %p193, %p194
      %p196 = scmp.ne.s32.totalorder %s184, %s185
      %p197 = scmp.eq.s32.totalorder %s28, 1
      %p198 = por %p196, %p197
      %p200 = scmp.ne.s32.totalorder %s185, %s199
      %p201 = scmp.eq.s32.totalorder %s28, 0
      %p202 = por %p200, %p201
      %s204 = sadd.s32 %s203, 1
      %p207 = scmp.eq.s32.totalorder %s22, 1
      %p208 = scmp.ne.s32.totalorder %s203, %s205
      %p209 = scmp.eq.s32.totalorder %s22, 0
      %p210 = por %p208, %p209
      %p211 = scmp.ne.s32.totalorder %s203, %s205
      %p212 = scmp.eq.s32.totalorder %s27, 1
      %p213 = por %p211, %p212
      %p214 = scmp.ne.s32.totalorder %s205, %s206
      %p215 = scmp.eq.s32.totalorder %s27, 0
      %p216 = por %p214, %p215
      %p217 = scmp.ne.s32.totalorder %s205, %s206
      %p218 = scmp.eq.s32.totalorder %s28, 1
      %p219 = por %p217, %p218
      %p221 = scmp.ne.s32.totalorder %s206, %s220
      %p222 = scmp.eq.s32.totalorder %s28, 0
      %p223 = por %p221, %p222
      %s225 = sadd.s32 %s224, 1
      %p228 = scmp.eq.s32.totalorder %s22, 1
      %p229 = scmp.ne.s32.totalorder %s224, %s226
      %p230 = scmp.eq.s32.totalorder %s22, 0
      %p231 = por %p229, %p230
      %p232 = scmp.ne.s32.totalorder %s224, %s226
      %p233 = scmp.eq.s32.totalorder %s27, 1
      %p234 = por %p232, %p233
      %p235 = scmp.ne.s32.totalorder %s226, %s227
      %p236 = scmp.eq.s32.totalorder %s27, 0
      %p237 = por %p235, %p236
      %p238 = scmp.ne.s32.totalorder %s226, %s227
      %p239 = scmp.eq.s32.totalorder %s28, 1
      %p240 = por %p238, %p239
      %p242 = scmp.ne.s32.totalorder %s227, %s241
      %p243 = scmp.eq.s32.totalorder %s28, 0
      %p244 = por %p242, %p243
      %s246 = sadd.s32 %s245, 1
      %p249 = scmp.eq.s32.totalorder %s22, 1
      %p250 = scmp.ne.s32.totalorder %s245, %s247
      %p251 = scmp.eq.s32.totalorder %s22, 0
      %p252 = por %p250, %p251
      %p253 = scmp.ne.s32.totalorder %s245, %s247
      %p254 = scmp.eq.s32.totalorder %s27, 1
      %p255 = por %p253, %p254
      %p256 = scmp.ne.s32.totalorder %s247, %s248
      %p257 = scmp.eq.s32.totalorder %s27, 0
      %p258 = por %p256, %p257
      %p259 = scmp.ne.s32.totalorder %s247, %s248
      %p260 = scmp.eq.s32.totalorder %s28, 1
      %p261 = por %p259, %p260
      %p263 = scmp.ne.s32.totalorder %s248, %s262
      %p264 = scmp.eq.s32.totalorder %s28, 0
      %p265 = por %p263, %p264
      %s267 = sadd.s32 %s266, 1
      %p270 = scmp.eq.s32.totalorder %s22, 1
      %p271 = scmp.ne.s32.totalorder %s266, %s268
      %p272 = scmp.eq.s32.totalorder %s22, 0
      %p273 = por %p271, %p272
      %p274 = scmp.ne.s32.totalorder %s266, %s268
      %p275 = scmp.eq.s32.totalorder %s27, 1
      %p276 = por %p274, %p275
      %p277 = scmp.ne.s32.totalorder %s268, %s269
      %p278 = scmp.eq.s32.totalorder %s27, 0
      %p279 = por %p277, %p278
      %p280 = scmp.ne.s32.totalorder %s268, %s269
      %p281 = scmp.eq.s32.totalorder %s28, 1
      %p282 = por %p280, %p281
      %p284 = scmp.ne.s32.totalorder %s269, %s283
      %p285 = scmp.eq.s32.totalorder %s28, 0
      %p286 = por %p284, %p285
      %s288 = sadd.s32 %s287, 1
      %p291 = scmp.eq.s32.totalorder %s22, 1
      %p292 = scmp.ne.s32.totalorder %s287, %s289
      %p293 = scmp.eq.s32.totalorder %s22, 0
      %p294 = por %p292, %p293
      %p295 = scmp.ne.s32.totalorder %s287, %s289
      %p296 = scmp.eq.s32.totalorder %s27, 1
      %p297 = por %p295, %p296
      %p298 = scmp.ne.s32.totalorder %s289, %s290
      %p299 = scmp.eq.s32.totalorder %s27, 0
      %p300 = por %p298, %p299
      %p301 = scmp.ne.s32.totalorder %s289, %s290
      %p302 = scmp.eq.s32.totalorder %s28, 1
      %p303 = por %p301, %p302
      %p305 = scmp.ne.s32.totalorder %s290, %s304
      %p306 = scmp.eq.s32.totalorder %s28, 0
      %p307 = por %p305, %p306
      %s308 = ssub.s32 %s22, %s29
      %p309 = scmp.eq.s32.totalorder %s308, 0
      %s311 = sadd.s32 %s310, 1
      %s312 = scalar_select %p309, %s310, %s311
      %p315 = pneg %p309
      %p316 = scmp.eq.s32.totalorder %s22, 1
      %p317 = por %p315, %p316
      %p318 = scmp.ne.s32.totalorder %s310, %s313
      %p319 = scmp.eq.s32.totalorder %s22, 0
      %p320 = por %p318, %p319
      %p321 = scmp.ne.s32.totalorder %s310, %s313
      %p322 = scmp.eq.s32.totalorder %s27, 1
      %p323 = por %p321, %p322
      %p324 = scmp.ne.s32.totalorder %s313, %s314
      %p325 = scmp.eq.s32.totalorder %s27, 0
      %p326 = por %p324, %p325
      %p327 = scmp.ne.s32.totalorder %s313, %s314
      %p328 = scmp.eq.s32.totalorder %s28, 1
      %p329 = por %p327, %p328
      %p331 = scmp.ne.s32.totalorder %s314, %s330
      %p332 = scmp.eq.s32.totalorder %s28, 0
      %p333 = por %p331, %p332
      %p334 = scmp.le.s32.totalorder 1, %s22
      %p335 = scmp.lt.s32.totalorder %s22, 3
      %p336 = pnand %p334, %p335
      %p337 = pneg %p336
      // Predicated region
      $region9: #{tpu_custom_call.1} parent=5 // pred_check
        _
      $region10: #{tpu_custom_call.1} parent=5 // pred_check_branch
        %339 = sbr.rel (%p336) target = $region12
      $region11: #{tpu_custom_call.1} parent=5 // pred_region
        %s340 = ssub.s32 %s22, 1
        // Predicated region
        $region13: #{tpu_custom_call.1} parent=11 // pred_check
          %p341 = pneg %p69
        $region14: #{tpu_custom_call.1} parent=11 // pred_check_branch
          %343 = sbr.rel (%p341) target = $region16
        $region15: #{tpu_custom_call.1} parent=11 // pred_region
          _
        $region16: #{tpu_custom_call.1} parent=11 // pred_fallthru
          _
        // Predicated region
        $region17: #{tpu_custom_call.1} parent=11 // pred_check
          %p344 = pneg %p90
        $region18: #{tpu_custom_call.1} parent=11 // pred_check_branch
          %346 = sbr.rel (%p344) target = $region20
        $region19: #{tpu_custom_call.1} parent=11 // pred_region
          _
        $region20: #{tpu_custom_call.1} parent=11 // pred_fallthru
          _
        // Predicated region
        $region21: #{tpu_custom_call.1} parent=11 // pred_check
          %p347 = pneg %p111
        $region22: #{tpu_custom_call.1} parent=11 // pred_check_branch
          %349 = sbr.rel (%p347) target = $region24
        $region23: #{tpu_custom_call.1} parent=11 // pred_region
          _
        $region24: #{tpu_custom_call.1} parent=11 // pred_fallthru
          _
        // Predicated region
        $region25: #{tpu_custom_call.1} parent=11 // pred_check
          %p350 = pneg %p132
        $region26: #{tpu_custom_call.1} parent=11 // pred_check_branch
          %352 = sbr.rel (%p350) target = $region28
        $region27: #{tpu_custom_call.1} parent=11 // pred_region
          _
        $region28: #{tpu_custom_call.1} parent=11 // pred_fallthru
          _
        // Predicated region
        $region29: #{tpu_custom_call.1} parent=11 // pred_check
          %p353 = pneg %p153
        $region30: #{tpu_custom_call.1} parent=11 // pred_check_branch
          %355 = sbr.rel (%p353) target = $region32
        $region31: #{tpu_custom_call.1} parent=11 // pred_region
          _
        $region32: #{tpu_custom_call.1} parent=11 // pred_fallthru
          _
        // Predicated region
        $region33: #{tpu_custom_call.1} parent=11 // pred_check
          %p356 = pneg %p174
        $region34: #{tpu_custom_call.1} parent=11 // pred_check_branch
          %358 = sbr.rel (%p356) target = $region36
        $region35: #{tpu_custom_call.1} parent=11 // pred_region
          _
        $region36: #{tpu_custom_call.1} parent=11 // pred_fallthru
          _
        // Predicated region
        $region37: #{tpu_custom_call.1} parent=11 // pred_check
          %p359 = pneg %p195
        $region38: #{tpu_custom_call.1} parent=11 // pred_check_branch
          %361 = sbr.rel (%p359) target = $region40
        $region39: #{tpu_custom_call.1} parent=11 // pred_region
          _
        $region40: #{tpu_custom_call.1} parent=11 // pred_fallthru
          _
        // Predicated region
        $region41: #{tpu_custom_call.1} parent=11 // pred_check
          %p362 = pneg %p216
        $region42: #{tpu_custom_call.1} parent=11 // pred_check_branch
          %364 = sbr.rel (%p362) target = $region44
        $region43: #{tpu_custom_call.1} parent=11 // pred_region
          _
        $region44: #{tpu_custom_call.1} parent=11 // pred_fallthru
          _
        // Predicated region
        $region45: #{tpu_custom_call.1} parent=11 // pred_check
          %p365 = pneg %p237
        $region46: #{tpu_custom_call.1} parent=11 // pred_check_branch
          %367 = sbr.rel (%p365) target = $region48
        $region47: #{tpu_custom_call.1} parent=11 // pred_region
          _
        $region48: #{tpu_custom_call.1} parent=11 // pred_fallthru
          _
        // Predicated region
        $region49: #{tpu_custom_call.1} parent=11 // pred_check
          %p368 = pneg %p258
        $region50: #{tpu_custom_call.1} parent=11 // pred_check_branch
          %370 = sbr.rel (%p368) target = $region52
        $region51: #{tpu_custom_call.1} parent=11 // pred_region
          _
        $region52: #{tpu_custom_call.1} parent=11 // pred_fallthru
          _
        // Predicated region
        $region53: #{tpu_custom_call.1} parent=11 // pred_check
          %p371 = pneg %p279
        $region54: #{tpu_custom_call.1} parent=11 // pred_check_branch
          %373 = sbr.rel (%p371) target = $region56
        $region55: #{tpu_custom_call.1} parent=11 // pred_region
          _
        $region56: #{tpu_custom_call.1} parent=11 // pred_fallthru
          _
        // Predicated region
        $region57: #{tpu_custom_call.1} parent=11 // pred_check
          %p374 = pneg %p300
        $region58: #{tpu_custom_call.1} parent=11 // pred_check_branch
          %376 = sbr.rel (%p374) target = $region60
        $region59: #{tpu_custom_call.1} parent=11 // pred_region
          _
        $region60: #{tpu_custom_call.1} parent=11 // pred_fallthru
          _
      $region12: #{tpu_custom_call.1} parent=5 // pred_fallthru
        _
      %p377 = scmp.lt.s32.totalorder %s22, 2
      // Predicated region
      $region61: #{tpu_custom_call.1} parent=5 // pred_check
        %p378 = pneg %p377
      $region62: #{tpu_custom_call.1} parent=5 // pred_check_branch
        %380 = sbr.rel (%p378) target = $region64
      $region63: #{tpu_custom_call.1} parent=5 // pred_region
        // Predicated region
        $region65: #{tpu_custom_call.1} parent=63 // pred_check
          %p381 = pneg %p42
        $region66: #{tpu_custom_call.1} parent=63 // pred_check_branch
          %383 = sbr.rel (%p381) target = $region68
        $region67: #{tpu_custom_call.1} parent=63 // pred_region
          %p384 = scmp.lt.s32.totalorder %s22, 1
          %s385 = scalar_select %p384, %s22, 1
          %s386 = smul.addr %s385, 2
          %s387 = smul.addr %s386, 8
          %s388 = scalar_lea.vmem %s0, %s387
        $region68: #{tpu_custom_call.1} parent=63 // pred_fallthru
          _
      $region64: #{tpu_custom_call.1} parent=5 // pred_fallthru
        _
      %p389 = scmp.le.s32.totalorder 1, %s22
      %p390 = scmp.lt.s32.totalorder %s22, 3
      %p391 = pnand %p389, %p390
      %p392 = pneg %p391
      // Predicated region
      $region69: #{tpu_custom_call.1} parent=5 // pred_check
        _
      $region70: #{tpu_custom_call.1} parent=5 // pred_check_branch
        %394 = sbr.rel (%p391) target = $region72
      $region71: #{tpu_custom_call.1} parent=5 // pred_region
        %s395 = ssub.s32 %s22, 1
        %p396 = scmp.lt.s32.totalorder %s27, 1
        %s397 = scalar_select %p396, %s27, 1
        %s398 = smul.addr %s397, 2
        %s399 = smul.addr %s398, 8
        %s400 = scalar_lea.vmem %s0, %s399
        %p401 = pneg %p48
        %p402 = pneg %p45
        %p403 = pneg %p69
        %p404 = pneg %p66
        %p405 = pneg %p90
        %p406 = pneg %p87
        %p407 = pneg %p111
        %p408 = pneg %p108
        %p409 = pneg %p132
        %p410 = pneg %p129
        %p411 = pneg %p153
        %p412 = pneg %p150
        %p413 = pneg %p174
        %p414 = pneg %p171
        %p415 = pneg %p195
        %p416 = pneg %p192
        %p417 = pneg %p216
        %p418 = pneg %p213
        %p419 = pneg %p237
        %p420 = pneg %p234
        %p421 = pneg %p258
        %p422 = pneg %p255
        %p423 = pneg %p279
        %p424 = pneg %p276
        %p425 = pneg %p300
        %p426 = pneg %p297
        %p427 = pneg %p326
        %p428 = pneg %p323
        %s429 = sand.u32 %s313, 1
        %s430 = scalar_lea.sflag [#allocation3], %s429
        %s431 = sand.u32 %s313, 1
        %s432 = smul.addr %s431, 16
        %s433 = scalar_lea.vmem [#allocation2], %s432
        %p434 = scmp.lt.s32.totalorder %s27, 1
        %s435 = scalar_select %p434, %s27, 1
        %s436 = smul.addr %s435, 2
        %s437 = smul.addr %s436, 8
        %s438 = scalar_lea.vmem %s0, %s437
        %v439 = vlaneseq
        %v440 = vand.u32 %v439, 127
        %v441 = vadd.s32 %v440, 128
        %vm442 = vcmp.lt.s32.totalorder %v440, 0
        %v443 = vsub.s32 0, %v440
        %v444 = vsel %vm442, %v443, %v440
        %v445 = vshrl.u32 %v444, 4
        %v446 = vand.u32 %v444, 15
        %v447 = vsub.s32 0, %v446
        %v448 = vsel %vm442, %v447, %v446
        %vm449 = vcmp.lt.s32.totalorder %v441, 0
        %v450 = vsub.s32 0, %v441
        %v451 = vsel %vm449, %v450, %v441
        %v452 = vshrl.u32 %v451, 4
        %v453 = vand.u32 %v451, 15
        %v454 = vsub.s32 0, %v453
        %v455 = vsel %vm449, %v454, %v453
        %vm456 = vcmp.ne.s32.totalorder %v448, 0
        %vm457 = vcmp.ne.s32.totalorder %v455, 0
        %vm458 = vcmp.lt.s32.totalorder %v448, 0
        %vm459 = vcmp.lt.s32.totalorder %v455, 0
        %vm460 = vmand %vm458, %vm456
        %vm461 = vmand %vm459, %vm457
        %v462 = vadd.s32 %v448, 16
        %v463 = vadd.s32 %v455, 16
        %v464 = vsel %vm460, %v462, %v448
        %v465 = vsel %vm461, %v463, %v455
        %v466 = vld [vmem:[%s438] sm:$0xff]
        %v467 = vld [vmem:[%s438 + $0x8] sm:$0xff]
        %v468 = vld [vmem:[%s2] sm:$0xff]
        %471 = vrot.lane.b32.xlu0 %v466, 17
        %v472 = vpop.permute.xlu0 %471
        %473 = vrot.lane.b32.xlu0 %v467, 17
        %v474 = vpop.permute.xlu0 %473
        %vm475 = vcmask 138240
        %v476 = vsel %vm475, %v472, %v474
        %v480 = vsel %vm475, 0.0, %v472
        %v481 = vsel %vm475, %v474, 0.0
        %vm482 = vcmp.ne.s32.totalorder %v464, 0
        %vm483 = vcmp.ne.s32.totalorder %v465, 0
        %v484 = vsel %vm482, 1, 0
        %v485 = vsel %vm483, 1, 0
        %vm486 = vcmp.eq.s32.totalorder %v484, 1
        %vm487 = vcmp.eq.s32.totalorder %v485, 1
        %v488 = vsel %vm486, %v480, 0.0
        %v489 = vsel %vm487, %v476, 0.0
        %vm490 = vcmp.ne.s32.totalorder %v464, 15
        %vm491 = vcmp.ne.s32.totalorder %v465, 15
        %v492 = vsel %vm490, 1, 0
        %v493 = vsel %vm491, 1, 0
        %vm494 = vcmp.eq.s32.totalorder %v492, 1
        %vm495 = vcmp.eq.s32.totalorder %v493, 1
        %498 = vrot.lane.b32.xlu0 %v480, 126
        %v499 = vpop.permute.xlu0 %498
        %500 = vrot.lane.b32.xlu0 %v476, 126
        %v501 = vpop.permute.xlu0 %500
        %502 = vrot.lane.b32.xlu0 %v481, 126
        %v503 = vpop.permute.xlu0 %502
        %vm504 = vcmask 1031168
        %v505 = vsel %vm504, %v499, %v501
        %v506 = vsel %vm504, %v501, %v503
        %v509 = vsel %vm494, %v505, 0.0
        %v510 = vsel %vm495, %v506, 0.0
        %511 = vrot.lane.b32.xlu0 %v480, 112
        %v512 = vpop.permute.xlu0 %511
        %513 = vrot.lane.b32.xlu0 %v476, 112
        %v514 = vpop.permute.xlu0 %513
        %515 = vrot.lane.b32.xlu0 %v481, 112
        %v516 = vpop.permute.xlu0 %515
        %vm517 = vcmask 916480
        %v518 = vsel %vm517, %v512, %v514
        %v519 = vsel %vm517, %v514, %v516
        %v522 = vsel %vm486, %v518, 0.0
        %v523 = vsel %vm487, %v519, 0.0
        %524 = vrot.lane.b32.xlu0 %v480, 110
        %v525 = vpop.permute.xlu0 %524
        %526 = vrot.lane.b32.xlu0 %v476, 110
        %v527 = vpop.permute.xlu0 %526
        %528 = vrot.lane.b32.xlu0 %v481, 110
        %v529 = vpop.permute.xlu0 %528
        %vm530 = vcmask 900096
        %v531 = vsel %vm530, %v525, %v527
        %v532 = vsel %vm530, %v527, %v529
        %v535 = vsel %vm494, %v531, 0.0
        %v536 = vsel %vm495, %v532, 0.0
        %537 = vrot.lane.b32.xlu0 %v480, 96
        %v538 = vpop.permute.xlu0 %537
        %539 = vrot.lane.b32.xlu0 %v476, 96
        %v540 = vpop.permute.xlu0 %539
        %541 = vrot.lane.b32.xlu0 %v481, 96
        %v542 = vpop.permute.xlu0 %541
        %vm543 = vcmask 785408
        %v544 = vsel %vm543, %v538, %v540
        %v545 = vsel %vm543, %v540, %v542
        %v548 = vsel %vm486, %v544, 0.0
        %v549 = vsel %vm487, %v545, 0.0
        %550 = vrot.lane.b32.xlu0 %v480, 94
        %v551 = vpop.permute.xlu0 %550
        %552 = vrot.lane.b32.xlu0 %v476, 94
        %v553 = vpop.permute.xlu0 %552
        %554 = vrot.lane.b32.xlu0 %v481, 94
        %v555 = vpop.permute.xlu0 %554
        %vm556 = vcmask 769024
        %v557 = vsel %vm556, %v551, %v553
        %v558 = vsel %vm556, %v553, %v555
        %v561 = vsel %vm494, %v557, 0.0
        %v562 = vsel %vm495, %v558, 0.0
        %563 = vrot.lane.b32.xlu0 %v480, 127
        %v564 = vpop.permute.xlu0 %563
        %565 = vrot.lane.b32.xlu0 %v476, 127
        %v566 = vpop.permute.xlu0 %565
        %567 = vrot.lane.b32.xlu0 %v481, 127
        %v568 = vpop.permute.xlu0 %567
        %vm569 = vcmask 1039360
        %v570 = vsel %vm569, %v564, %v566
        %v571 = vsel %vm569, %v566, %v568
        %574 = vrot.lane.b32.xlu0 %v480, 111
        %v575 = vpop.permute.xlu0 %574
        %576 = vrot.lane.b32.xlu0 %v476, 111
        %v577 = vpop.permute.xlu0 %576
        %578 = vrot.lane.b32.xlu0 %v481, 111
        %v579 = vpop.permute.xlu0 %578
        %vm580 = vcmask 908288
        %v581 = vsel %vm580, %v575, %v577
        %v582 = vsel %vm580, %v577, %v579
        %585 = vrot.lane.b32.xlu0 %v480, 95
        %v586 = vpop.permute.xlu0 %585
        %587 = vrot.lane.b32.xlu0 %v476, 95
        %v588 = vpop.permute.xlu0 %587
        %589 = vrot.lane.b32.xlu0 %v481, 95
        %v590 = vpop.permute.xlu0 %589
        %vm591 = vcmask 777216
        %v592 = vsel %vm591, %v586, %v588
        %v593 = vsel %vm591, %v588, %v590
        %v596 = vld [vmem:[%s1] sm:$0xff]
        %598 = vset.pattern.permute.xlu0 0
        %599 = vperm.xlu0 %598, %v468
        %v600 = vpop.permute.xlu0 %599
        %vm602 = vcmask 588800
        %v604 = vsel %vm602, %v596, 0
        %606 = vmatprep.subr.mxu0 %v489
        %607 = vmatpush1.msra.mxu0 %v488
        %608 = vmatprep.subr.mxu0 %v571
        %609 = vmatpush1.msra.mxu0 %v570
        %610 = vmatprep.subr.mxu0 %v510
        %611 = vmatpush1.msra.mxu0 %v509
        %612 = vmatprep.subr.mxu0 %v523
        %613 = vmatpush1.msra.mxu0 %v522
        %614 = vmatprep.subr.mxu0 %v582
        %615 = vmatpush1.msra.mxu0 %v581
        %616 = vmatprep.subr.mxu0 %v536
        %617 = vmatpush1.msra.mxu0 %v535
        %618 = vmatprep.subr.mxu0 %v549
        %619 = vmatpush1.msra.mxu0 %v548
        %620 = vmatprep.subr.mxu0 %v593
        %621 = vmatpush1.msra.mxu0 %v592
        %622 = vmatprep.subr.mxu0 %v562
        %623 = vmatpush1.msra.mxu0 %v561
        %624 = vmatprep.subr.mxu0 0.0
        %625 = vmatpush1.msra.mxu0 0.0
        %626 = vmatprep.subr.mxu0 0.0
        %627 = vmatpush1.msra.mxu0 0.0
        %628 = vmatprep.subr.mxu0 0.0
        %629 = vmatpush1.msra.mxu0 0.0
        %630 = vmatprep.subr.mxu0 0.0
        %631 = vmatpush1.msra.mxu0 0.0
        %632 = vmatprep.subr.mxu0 0.0
        %633 = vmatpush1.msra.mxu0 0.0
        %634 = vmatprep.subr.mxu0 0.0
        %635 = vmatpush1.msra.mxu0 0.0
        %636 = vmatprep.subr.mxu0 0.0
        %637 = vmatpush1.msra.mxu0 0.0
        %638 = vmatprep.subr.mxu0 0.0
        %639 = vmatpush1.msra.mxu0 0.0
        %640 = vmatprep.subr.mxu0 0.0
        %641 = vmatpush1.msra.mxu0 0.0
        %642 = vmatprep.subr.mxu0 0.0
        %643 = vmatpush1.msra.mxu0 0.0
        %644 = vmatprep.subr.mxu0 0.0
        %645 = vmatpush1.msra.mxu0 0.0
        %646 = vmatprep.subr.mxu0 0.0
        %647 = vmatpush1.msra.mxu0 0.0
        %648 = vmatprep.subr.mxu0 0.0
        %649 = vmatpush1.msra.mxu0 0.0
        %650 = vmatprep.subr.mxu0 0.0
        %651 = vmatpush1.msra.mxu0 0.0
        %652 = vmatprep.subr.mxu0 0.0
        %653 = vmatpush1.msra.mxu0 0.0
        %654 = vmatprep.subr.mxu0 0.0
        %655 = vmatpush1.msra.mxu0 0.0
        %656 = vmatprep.subr.mxu0 0.0
        %657 = vmatpush1.msra.mxu0 0.0
        %658 = vmatprep.subr.mxu0 0.0
        %659 = vmatpush1.msra.mxu0 0.0
        %660 = vmatprep.subr.mxu0 0.0
        %661 = vmatpush1.msra.mxu0 0.0
        %662 = vmatprep.subr.mxu0 0.0
        %663 = vmatpush1.msra.mxu0 0.0
        %664 = vmatprep.subr.mxu0 0.0
        %665 = vmatpush1.msra.mxu0 0.0
        %666 = vmatprep.subr.mxu0 0.0
        %667 = vmatpush1.msra.mxu0 0.0
        %668 = vmatprep.subr.mxu0 0.0
        %669 = vmatpush1.msra.mxu0 0.0
        %670 = vmatprep.mubr.f32.mxu0 0.0
        %671 = vmatmul.mubr.f32.gmra.mrb[0].mxu0 %v604
        %v672 = vpop.f32.mrb[0].mxu0
        %v673 = vadd.f32 %v600, %v672
        %v674 = vpop.f32.mrb[0].mxu0
        %v675 = vadd.f32 %v600, %v674
        %676 = vdwg.mxu0
        %v677 = vlaneseq
        %v678 = vshrl.u32 %v677, 7
        %vm679 = vcmp.lt.s32.totalorder %v678, 4
        %v680 = vadd.f32 %v673, %v675
        %681 = vadd.xlane.f32.xlu0 %v680
        %v682 = vpop.xlane.xlu0 %681
        %v683 = vrcp.pop 256.0
        %v684 = vmul.f32 %v682, %v683
        %v685 = vsub.f32 %v673, %v684
        %v686 = vsub.f32 %v675, %v684
        %v687 = vmul.f32 %v685, %v685
        %v688 = vmul.f32 %v686, %v686
        %v689 = vadd.f32 %v687, %v688
        %690 = vadd.xlane.f32.xlu0 %v689
        %v691 = vpop.xlane.xlu0 %690
        %v692 = vmul.f32 %v691, %v683
        %v693 = vadd.f32 %v692, 1e-05
        %v694 = vrsqrt.pop %v693
        %v695 = vsel %vm679, %v694, 1.0
        %v696 = vld [vmem:[%s3] sm:$0xff]
        %v697 = vmul.f32 %v696, %v695
        %v698 = vld [vmem:[%s4] sm:$0xff]
        %v699 = vsel %vm679, %v684, 0.0
        %v700 = vmul.f32 %v699, %v697
        %v701 = vsub.f32 %v698, %v700
        %703 = vset.pattern.permute.xlu0 0
        %704 = vperm.xlu0 %703, %v697
        %v705 = vpop.permute.xlu0 %704
        %v707 = vmul.f32 %v673, %v705
        %v708 = vmul.f32 %v675, %v705
        %710 = vset.pattern.permute.xlu0 0
        %711 = vperm.xlu0 %710, %v701
        %v712 = vpop.permute.xlu0 %711
        %v714 = vadd.f32 %v707, %v712
        %v715 = vadd.f32 %v708, %v712
        %vm716 = vcmp.ge.f32.partialorder %v714, 0.0
        %vm717 = vcmp.ge.f32.partialorder %v715, 0.0
        %v718 = vmul.f32 %v714, 0.2
        %v719 = vmul.f32 %v715, 0.2
        %v720 = vsel %vm716, %v714, %v718
        %v721 = vsel %vm717, %v715, %v719
        %v722 = vadd.f32 %v720, %v721
        %723 = vadd.xlane.f32.xlu0 %v722
        %v724 = vpop.xlane.xlu0 %723
        %v725 = vmul.f32 %v724, %v683
        %v726 = vsub.f32 %v720, %v725
        %v727 = vsub.f32 %v721, %v725
        %v728 = vmul.f32 %v726, %v726
        %v729 = vmul.f32 %v727, %v727
        %v730 = vadd.f32 %v728, %v729
        %731 = vadd.xlane.f32.xlu0 %v730
        %v732 = vpop.xlane.xlu0 %731
        %v733 = vrcp.pop 255.0
        %v734 = vmul.f32 %v732, %v733
        %v735 = vadd.f32 %v734, 0.0001
        %v736 = vmul.f32 %v735, 4.0
        %v737 = vrcp.pop %v736
        %v738 = vmul.f32 1.0, %v737
        %v739 = vmul.f32 %v728, %v738
        %v740 = vmul.f32 %v729, %v738
        %v741 = vadd.f32 %v739, 0.5
        %v742 = vadd.f32 %v740, 0.5
        %v743 = vsub.f32 0.0, %v741
        %v744 = vsub.f32 0.0, %v742
        %v745 = vmul.f32 %v743, 1.442695
        %v746 = vpow.pop %v745
        %v747 = vmul.f32 %v744, 1.442695
        %v748 = vpow.pop %v747
        %v749 = vadd.f32 %v746, 1.0
        %v750 = vadd.f32 %v748, 1.0
        %v751 = vrcp.pop %v749
        %v752 = vmul.f32 1.0, %v751
        %v753 = vrcp.pop %v750
        %v754 = vmul.f32 1.0, %v753
        %v755 = vmul.f32 %v720, %v752
        %v756 = vmul.f32 %v721, %v754
        %v757 = vld [vmem:[%s6] sm:$0xff]
        %760 = vrot.lane.b32.xlu0 %v755, 17
        %v761 = vpop.permute.xlu0 %760
        %762 = vrot.lane.b32.xlu0 %v756, 17
        %v763 = vpop.permute.xlu0 %762
        %v764 = vsel %vm475, %v761, %v763
        %v768 = vsel %vm475, 0.0, %v761
        %v769 = vsel %vm475, %v763, 0.0
        %v770 = vsel %vm486, %v768, 0.0
        %v771 = vsel %vm487, %v764, 0.0
        %774 = vrot.lane.b32.xlu0 %v768, 126
        %v775 = vpop.permute.xlu0 %774
        %776 = vrot.lane.b32.xlu0 %v764, 126
        %v777 = vpop.permute.xlu0 %776
        %778 = vrot.lane.b32.xlu0 %v769, 126
        %v779 = vpop.permute.xlu0 %778
        %v780 = vsel %vm504, %v775, %v777
        %v781 = vsel %vm504, %v777, %v779
        %v784 = vsel %vm494, %v780, 0.0
        %v785 = vsel %vm495, %v781, 0.0
        %786 = vrot.lane.b32.xlu0 %v768, 112
        %v787 = vpop.permute.xlu0 %786
        %788 = vrot.lane.b32.xlu0 %v764, 112
        %v789 = vpop.permute.xlu0 %788
        %790 = vrot.lane.b32.xlu0 %v769, 112
        %v791 = vpop.permute.xlu0 %790
        %v792 = vsel %vm517, %v787, %v789
        %v793 = vsel %vm517, %v789, %v791
        %v796 = vsel %vm486, %v792, 0.0
        %v797 = vsel %vm487, %v793, 0.0
        %798 = vrot.lane.b32.xlu0 %v768, 110
        %v799 = vpop.permute.xlu0 %798
        %800 = vrot.lane.b32.xlu0 %v764, 110
        %v801 = vpop.permute.xlu0 %800
        %802 = vrot.lane.b32.xlu0 %v769, 110
        %v803 = vpop.permute.xlu0 %802
        %v804 = vsel %vm530, %v799, %v801
        %v805 = vsel %vm530, %v801, %v803
        %v808 = vsel %vm494, %v804, 0.0
        %v809 = vsel %vm495, %v805, 0.0
        %810 = vrot.lane.b32.xlu0 %v768, 96
        %v811 = vpop.permute.xlu0 %810
        %812 = vrot.lane.b32.xlu0 %v764, 96
        %v813 = vpop.permute.xlu0 %812
        %814 = vrot.lane.b32.xlu0 %v769, 96
        %v815 = vpop.permute.xlu0 %814
        %v816 = vsel %vm543, %v811, %v813
        %v817 = vsel %vm543, %v813, %v815
        %v820 = vsel %vm486, %v816, 0.0
        %v821 = vsel %vm487, %v817, 0.0
        %822 = vrot.lane.b32.xlu0 %v768, 94
        %v823 = vpop.permute.xlu0 %822
        %824 = vrot.lane.b32.xlu0 %v764, 94
        %v825 = vpop.permute.xlu0 %824
        %826 = vrot.lane.b32.xlu0 %v769, 94
        %v827 = vpop.permute.xlu0 %826
        %v828 = vsel %vm556, %v823, %v825
        %v829 = vsel %vm556, %v825, %v827
        %v832 = vsel %vm494, %v828, 0.0
        %v833 = vsel %vm495, %v829, 0.0
        %834 = vrot.lane.b32.xlu0 %v768, 127
        %v835 = vpop.permute.xlu0 %834
        %836 = vrot.lane.b32.xlu0 %v764, 127
        %v837 = vpop.permute.xlu0 %836
        %838 = vrot.lane.b32.xlu0 %v769, 127
        %v839 = vpop.permute.xlu0 %838
        %v840 = vsel %vm569, %v835, %v837
        %v841 = vsel %vm569, %v837, %v839
        %844 = vrot.lane.b32.xlu0 %v768, 111
        %v845 = vpop.permute.xlu0 %844
        %846 = vrot.lane.b32.xlu0 %v764, 111
        %v847 = vpop.permute.xlu0 %846
        %848 = vrot.lane.b32.xlu0 %v769, 111
        %v849 = vpop.permute.xlu0 %848
        %v850 = vsel %vm580, %v845, %v847
        %v851 = vsel %vm580, %v847, %v849
        %854 = vrot.lane.b32.xlu0 %v768, 95
        %v855 = vpop.permute.xlu0 %854
        %856 = vrot.lane.b32.xlu0 %v764, 95
        %v857 = vpop.permute.xlu0 %856
        %858 = vrot.lane.b32.xlu0 %v769, 95
        %v859 = vpop.permute.xlu0 %858
        %v860 = vsel %vm591, %v855, %v857
        %v861 = vsel %vm591, %v857, %v859
        %v864 = vld [vmem:[%s5] sm:$0xff]
        %866 = vset.pattern.permute.xlu0 0
        %867 = vperm.xlu0 %866, %v757
        %v868 = vpop.permute.xlu0 %867
        %v871 = vsel %vm602, %v864, 0
        %873 = vmatprep.subr.mxu0 %v771
        %874 = vmatpush1.msra.mxu0 %v770
        %875 = vmatprep.subr.mxu0 %v841
        %876 = vmatpush1.msra.mxu0 %v840
        %877 = vmatprep.subr.mxu0 %v785
        %878 = vmatpush1.msra.mxu0 %v784
        %879 = vmatprep.subr.mxu0 %v797
        %880 = vmatpush1.msra.mxu0 %v796
        %881 = vmatprep.subr.mxu0 %v851
        %882 = vmatpush1.msra.mxu0 %v850
        %883 = vmatprep.subr.mxu0 %v809
        %884 = vmatpush1.msra.mxu0 %v808
        %885 = vmatprep.subr.mxu0 %v821
        %886 = vmatpush1.msra.mxu0 %v820
        %887 = vmatprep.subr.mxu0 %v861
        %888 = vmatpush1.msra.mxu0 %v860
        %889 = vmatprep.subr.mxu0 %v833
        %890 = vmatpush1.msra.mxu0 %v832
        %891 = vmatprep.subr.mxu0 0.0
        %892 = vmatpush1.msra.mxu0 0.0
        %893 = vmatprep.subr.mxu0 0.0
        %894 = vmatpush1.msra.mxu0 0.0
        %895 = vmatprep.subr.mxu0 0.0
        %896 = vmatpush1.msra.mxu0 0.0
        %897 = vmatprep.subr.mxu0 0.0
        %898 = vmatpush1.msra.mxu0 0.0
        %899 = vmatprep.subr.mxu0 0.0
        %900 = vmatpush1.msra.mxu0 0.0
        %901 = vmatprep.subr.mxu0 0.0
        %902 = vmatpush1.msra.mxu0 0.0
        %903 = vmatprep.subr.mxu0 0.0
        %904 = vmatpush1.msra.mxu0 0.0
        %905 = vmatprep.subr.mxu0 0.0
        %906 = vmatpush1.msra.mxu0 0.0
        %907 = vmatprep.subr.mxu0 0.0
        %908 = vmatpush1.msra.mxu0 0.0
        %909 = vmatprep.subr.mxu0 0.0
        %910 = vmatpush1.msra.mxu0 0.0
        %911 = vmatprep.subr.mxu0 0.0
        %912 = vmatpush1.msra.mxu0 0.0
        %913 = vmatprep.subr.mxu0 0.0
        %914 = vmatpush1.msra.mxu0 0.0
        %915 = vmatprep.subr.mxu0 0.0
        %916 = vmatpush1.msra.mxu0 0.0
        %917 = vmatprep.subr.mxu0 0.0
        %918 = vmatpush1.msra.mxu0 0.0
        %919 = vmatprep.subr.mxu0 0.0
        %920 = vmatpush1.msra.mxu0 0.0
        %921 = vmatprep.subr.mxu0 0.0
        %922 = vmatpush1.msra.mxu0 0.0
        %923 = vmatprep.subr.mxu0 0.0
        %924 = vmatpush1.msra.mxu0 0.0
        %925 = vmatprep.subr.mxu0 0.0
        %926 = vmatpush1.msra.mxu0 0.0
        %927 = vmatprep.subr.mxu0 0.0
        %928 = vmatpush1.msra.mxu0 0.0
        %929 = vmatprep.subr.mxu0 0.0
        %930 = vmatpush1.msra.mxu0 0.0
        %931 = vmatprep.subr.mxu0 0.0
        %932 = vmatpush1.msra.mxu0 0.0
        %933 = vmatprep.subr.mxu0 0.0
        %934 = vmatpush1.msra.mxu0 0.0
        %935 = vmatprep.subr.mxu0 0.0
        %936 = vmatpush1.msra.mxu0 0.0
        %937 = vmatprep.mubr.f32.mxu0 0.0
        %938 = vmatmul.mubr.f32.gmra.mrb[0].mxu0 %v871
        %v939 = vpop.f32.mrb[0].mxu0
        %v940 = vadd.f32 %v868, %v939
        %v941 = vpop.f32.mrb[0].mxu0
        %v942 = vadd.f32 %v868, %v941
        %943 = vdwg.mxu0
        %v944 = vld [vmem:[%s7] sm:$0xff]
        %v945 = vld [vmem:[%s8] sm:$0xff]
        %947 = vset.pattern.permute.xlu0 0
        %948 = vperm.xlu0 %947, %v945
        %v949 = vpop.permute.xlu0 %948
        %vm951 = vcmask 64512
        %v953 = vsel %vm951, %v944, 0
        %955 = vmatprep.subr.mxu0 %v467
        %956 = vmatpush1.msra.mxu0 %v466
        %957 = vmatprep.subr.mxu0 0.0
        %958 = vmatpush1.msra.mxu0 0.0
        %959 = vmatprep.subr.mxu0 0.0
        %960 = vmatpush1.msra.mxu0 0.0
        %961 = vmatprep.subr.mxu0 0.0
        %962 = vmatpush1.msra.mxu0 0.0
        %963 = vmatprep.subr.mxu0 0.0
        %964 = vmatpush1.msra.mxu0 0.0
        %965 = vmatprep.subr.mxu0 0.0
        %966 = vmatpush1.msra.mxu0 0.0
        %967 = vmatprep.subr.mxu0 0.0
        %968 = vmatpush1.msra.mxu0 0.0
        %969 = vmatprep.subr.mxu0 0.0
        %970 = vmatpush1.msra.mxu0 0.0
        %971 = vmatprep.subr.mxu0 0.0
        %972 = vmatpush1.msra.mxu0 0.0
        %973 = vmatprep.subr.mxu0 0.0
        %974 = vmatpush1.msra.mxu0 0.0
        %975 = vmatprep.subr.mxu0 0.0
        %976 = vmatpush1.msra.mxu0 0.0
        %977 = vmatprep.subr.mxu0 0.0
        %978 = vmatpush1.msra.mxu0 0.0
        %979 = vmatprep.subr.mxu0 0.0
        %980 = vmatpush1.msra.mxu0 0.0
        %981 = vmatprep.subr.mxu0 0.0
        %982 = vmatpush1.msra.mxu0 0.0
        %983 = vmatprep.subr.mxu0 0.0
        %984 = vmatpush1.msra.mxu0 0.0
        %985 = vmatprep.subr.mxu0 0.0
        %986 = vmatpush1.msra.mxu0 0.0
        %987 = vmatprep.subr.mxu0 0.0
        %988 = vmatpush1.msra.mxu0 0.0
        %989 = vmatprep.subr.mxu0 0.0
        %990 = vmatpush1.msra.mxu0 0.0
        %991 = vmatprep.subr.mxu0 0.0
        %992 = vmatpush1.msra.mxu0 0.0
        %993 = vmatprep.subr.mxu0 0.0
        %994 = vmatpush1.msra.mxu0 0.0
        %995 = vmatprep.subr.mxu0 0.0
        %996 = vmatpush1.msra.mxu0 0.0
        %997 = vmatprep.subr.mxu0 0.0
        %998 = vmatpush1.msra.mxu0 0.0
        %999 = vmatprep.subr.mxu0 0.0
        %1000 = vmatpush1.msra.mxu0 0.0
        %1001 = vmatprep.subr.mxu0 0.0
        %1002 = vmatpush1.msra.mxu0 0.0
        %1003 = vmatprep.subr.mxu0 0.0
        %1004 = vmatpush1.msra.mxu0 0.0
        %1005 = vmatprep.subr.mxu0 0.0
        %1006 = vmatpush1.msra.mxu0 0.0
        %1007 = vmatprep.subr.mxu0 0.0
        %1008 = vmatpush1.msra.mxu0 0.0
        %1009 = vmatprep.subr.mxu0 0.0
        %1010 = vmatpush1.msra.mxu0 0.0
        %1011 = vmatprep.subr.mxu0 0.0
        %1012 = vmatpush1.msra.mxu0 0.0
        %1013 = vmatprep.subr.mxu0 0.0
        %1014 = vmatpush1.msra.mxu0 0.0
        %1015 = vmatprep.subr.mxu0 0.0
        %1016 = vmatpush1.msra.mxu0 0.0
        %1017 = vmatprep.subr.mxu0 0.0
        %1018 = vmatpush1.msra.mxu0 0.0
        %1019 = vmatprep.mubr.f32.mxu0 0.0
        %1020 = vmatmul.mubr.f32.gmra.mrb[0].mxu0 %v953
        %v1021 = vpop.f32.mrb[0].mxu0
        %v1022 = vadd.f32 %v949, %v1021
        %v1023 = vpop.f32.mrb[0].mxu0
        %v1024 = vadd.f32 %v949, %v1023
        %1025 = vdwg.mxu0
        %v1026 = vld [vmem:[%s10] sm:$0xff]
        %1031 = vrot.lane.b32.xlu0 %v940, 17
        %v1032 = vpop.permute.xlu0 %1031
        %1033 = vrot.lane.b32.xlu0 %v942, 17
        %v1034 = vpop.permute.xlu0 %1033
        %1035 = vrot.lane.b32.xlu0 %v1022, 17
        %v1036 = vpop.permute.xlu0 %1035
        %1037 = vrot.lane.b32.xlu0 %v1024, 17
        %v1038 = vpop.permute.xlu0 %1037
        %v1039 = vsel %vm475, %v1032, %v1034
        %v1040 = vsel %vm475, %v1036, %v1038
        %v1047 = vsel %vm475, 0.0, %v1032
        %v1048 = vsel %vm475, 0.0, %v1036
        %v1049 = vsel %vm475, %v1034, 0.0
        %v1050 = vsel %vm475, %v1038, 0.0
        %v1051 = vsel %vm486, %v1047, 0.0
        %v1052 = vsel %vm487, %v1039, 0.0
        %v1053 = vsel %vm486, %v1048, 0.0
        %v1054 = vsel %vm487, %v1040, 0.0
        %1059 = vrot.lane.b32.xlu0 %v1047, 126
        %v1060 = vpop.permute.xlu0 %1059
        %1061 = vrot.lane.b32.xlu0 %v1039, 126
        %v1062 = vpop.permute.xlu0 %1061
        %1063 = vrot.lane.b32.xlu0 %v1049, 126
        %v1064 = vpop.permute.xlu0 %1063
        %1065 = vrot.lane.b32.xlu0 %v1048, 126
        %v1066 = vpop.permute.xlu0 %1065
        %1067 = vrot.lane.b32.xlu0 %v1040, 126
        %v1068 = vpop.permute.xlu0 %1067
        %1069 = vrot.lane.b32.xlu0 %v1050, 126
        %v1070 = vpop.permute.xlu0 %1069
        %v1071 = vsel %vm504, %v1060, %v1062
        %v1072 = vsel %vm504, %v1062, %v1064
        %v1073 = vsel %vm504, %v1066, %v1068
        %v1074 = vsel %vm504, %v1068, %v1070
        %v1079 = vsel %vm494, %v1071, 0.0
        %v1080 = vsel %vm495, %v1072, 0.0
        %v1081 = vsel %vm494, %v1073, 0.0
        %v1082 = vsel %vm495, %v1074, 0.0
        %1083 = vrot.lane.b32.xlu0 %v1047, 112
        %v1084 = vpop.permute.xlu0 %1083
        %1085 = vrot.lane.b32.xlu0 %v1039, 112
        %v1086 = vpop.permute.xlu0 %1085
        %1087 = vrot.lane.b32.xlu0 %v1049, 112
        %v1088 = vpop.permute.xlu0 %1087
        %1089 = vrot.lane.b32.xlu0 %v1048, 112
        %v1090 = vpop.permute.xlu0 %1089
        %1091 = vrot.lane.b32.xlu0 %v1040, 112
        %v1092 = vpop.permute.xlu0 %1091
        %1093 = vrot.lane.b32.xlu0 %v1050, 112
        %v1094 = vpop.permute.xlu0 %1093
        %v1095 = vsel %vm517, %v1084, %v1086
        %v1096 = vsel %vm517, %v1086, %v1088
        %v1097 = vsel %vm517, %v1090, %v1092
        %v1098 = vsel %vm517, %v1092, %v1094
        %v1103 = vsel %vm486, %v1095, 0.0
        %v1104 = vsel %vm487, %v1096, 0.0
        %v1105 = vsel %vm486, %v1097, 0.0
        %v1106 = vsel %vm487, %v1098, 0.0
        %1107 = vrot.lane.b32.xlu0 %v1047, 110
        %v1108 = vpop.permute.xlu0 %1107
        %1109 = vrot.lane.b32.xlu0 %v1039, 110
        %v1110 = vpop.permute.xlu0 %1109
        %1111 = vrot.lane.b32.xlu0 %v1049, 110
        %v1112 = vpop.permute.xlu0 %1111
        %1113 = vrot.lane.b32.xlu0 %v1048, 110
        %v1114 = vpop.permute.xlu0 %1113
        %1115 = vrot.lane.b32.xlu0 %v1040, 110
        %v1116 = vpop.permute.xlu0 %1115
        %1117 = vrot.lane.b32.xlu0 %v1050, 110
        %v1118 = vpop.permute.xlu0 %1117
        %v1119 = vsel %vm530, %v1108, %v1110
        %v1120 = vsel %vm530, %v1110, %v1112
        %v1121 = vsel %vm530, %v1114, %v1116
        %v1122 = vsel %vm530, %v1116, %v1118
        %v1127 = vsel %vm494, %v1119, 0.0
        %v1128 = vsel %vm495, %v1120, 0.0
        %v1129 = vsel %vm494, %v1121, 0.0
        %v1130 = vsel %vm495, %v1122, 0.0
        %1131 = vrot.lane.b32.xlu0 %v1047, 96
        %v1132 = vpop.permute.xlu0 %1131
        %1133 = vrot.lane.b32.xlu0 %v1039, 96
        %v1134 = vpop.permute.xlu0 %1133
        %1135 = vrot.lane.b32.xlu0 %v1049, 96
        %v1136 = vpop.permute.xlu0 %1135
        %1137 = vrot.lane.b32.xlu0 %v1048, 96
        %v1138 = vpop.permute.xlu0 %1137
        %1139 = vrot.lane.b32.xlu0 %v1040, 96
        %v1140 = vpop.permute.xlu0 %1139
        %1141 = vrot.lane.b32.xlu0 %v1050, 96
        %v1142 = vpop.permute.xlu0 %1141
        %v1143 = vsel %vm543, %v1132, %v1134
        %v1144 = vsel %vm543, %v1134, %v1136
        %v1145 = vsel %vm543, %v1138, %v1140
        %v1146 = vsel %vm543, %v1140, %v1142
        %v1151 = vsel %vm486, %v1143, 0.0
        %v1152 = vsel %vm487, %v1144, 0.0
        %v1153 = vsel %vm486, %v1145, 0.0
        %v1154 = vsel %vm487, %v1146, 0.0
        %1155 = vrot.lane.b32.xlu0 %v1047, 94
        %v1156 = vpop.permute.xlu0 %1155
        %1157 = vrot.lane.b32.xlu0 %v1039, 94
        %v1158 = vpop.permute.xlu0 %1157
        %1159 = vrot.lane.b32.xlu0 %v1049, 94
        %v1160 = vpop.permute.xlu0 %1159
        %1161 = vrot.lane.b32.xlu0 %v1048, 94
        %v1162 = vpop.permute.xlu0 %1161
        %1163 = vrot.lane.b32.xlu0 %v1040, 94
        %v1164 = vpop.permute.xlu0 %1163
        %1165 = vrot.lane.b32.xlu0 %v1050, 94
        %v1166 = vpop.permute.xlu0 %1165
        %v1167 = vsel %vm556, %v1156, %v1158
        %v1168 = vsel %vm556, %v1158, %v1160
        %v1169 = vsel %vm556, %v1162, %v1164
        %v1170 = vsel %vm556, %v1164, %v1166
        %v1175 = vsel %vm494, %v1167, 0.0
        %v1176 = vsel %vm495, %v1168, 0.0
        %v1177 = vsel %vm494, %v1169, 0.0
        %v1178 = vsel %vm495, %v1170, 0.0
        %1179 = vrot.lane.b32.xlu0 %v1047, 127
        %v1180 = vpop.permute.xlu0 %1179
        %1181 = vrot.lane.b32.xlu0 %v1039, 127
        %v1182 = vpop.permute.xlu0 %1181
        %1183 = vrot.lane.b32.xlu0 %v1049, 127
        %v1184 = vpop.permute.xlu0 %1183
        %1185 = vrot.lane.b32.xlu0 %v1048, 127
        %v1186 = vpop.permute.xlu0 %1185
        %1187 = vrot.lane.b32.xlu0 %v1040, 127
        %v1188 = vpop.permute.xlu0 %1187
        %1189 = vrot.lane.b32.xlu0 %v1050, 127
        %v1190 = vpop.permute.xlu0 %1189
        %v1191 = vsel %vm569, %v1180, %v1182
        %v1192 = vsel %vm569, %v1182, %v1184
        %v1193 = vsel %vm569, %v1186, %v1188
        %v1194 = vsel %vm569, %v1188, %v1190
        %1199 = vrot.lane.b32.xlu0 %v1047, 111
        %v1200 = vpop.permute.xlu0 %1199
        %1201 = vrot.lane.b32.xlu0 %v1039, 111
        %v1202 = vpop.permute.xlu0 %1201
        %1203 = vrot.lane.b32.xlu0 %v1049, 111
        %v1204 = vpop.permute.xlu0 %1203
        %1205 = vrot.lane.b32.xlu0 %v1048, 111
        %v1206 = vpop.permute.xlu0 %1205
        %1207 = vrot.lane.b32.xlu0 %v1040, 111
        %v1208 = vpop.permute.xlu0 %1207
        %1209 = vrot.lane.b32.xlu0 %v1050, 111
        %v1210 = vpop.permute.xlu0 %1209
        %v1211 = vsel %vm580, %v1200, %v1202
        %v1212 = vsel %vm580, %v1202, %v1204
        %v1213 = vsel %vm580, %v1206, %v1208
        %v1214 = vsel %vm580, %v1208, %v1210
        %1219 = vrot.lane.b32.xlu0 %v1047, 95
        %v1220 = vpop.permute.xlu0 %1219
        %1221 = vrot.lane.b32.xlu0 %v1039, 95
        %v1222 = vpop.permute.xlu0 %1221
        %1223 = vrot.lane.b32.xlu0 %v1049, 95
        %v1224 = vpop.permute.xlu0 %1223
        %1225 = vrot.lane.b32.xlu0 %v1048, 95
        %v1226 = vpop.permute.xlu0 %1225
        %1227 = vrot.lane.b32.xlu0 %v1040, 95
        %v1228 = vpop.permute.xlu0 %1227
        %1229 = vrot.lane.b32.xlu0 %v1050, 95
        %v1230 = vpop.permute.xlu0 %1229
        %v1231 = vsel %vm591, %v1220, %v1222
        %v1232 = vsel %vm591, %v1222, %v1224
        %v1233 = vsel %vm591, %v1226, %v1228
        %v1234 = vsel %vm591, %v1228, %v1230
        %v1239 = vld [vmem:[%s9] sm:$0xff]
        %v1240 = vld [vmem:[%s9 + $0x8] sm:$0xff]
        %1242 = vset.pattern.permute.xlu0 0
        %1243 = vperm.xlu0 %1242, %v1026
        %v1244 = vpop.permute.xlu0 %1243
        %vm1246 = vcmask 130048
        %v1248 = vsel %vm1246, %v1240, 0
        %1250 = vmatprep.subr.mxu0 %v1052
        %1251 = vmatpush1.msra.mxu0 %v1051
        %1252 = vmatprep.subr.mxu0 %v1054
        %1253 = vmatpush1.msra.mxu0 %v1053
        %1254 = vmatprep.subr.mxu0 %v1192
        %1255 = vmatpush1.msra.mxu0 %v1191
        %1256 = vmatprep.subr.mxu0 %v1194
        %1257 = vmatpush1.msra.mxu0 %v1193
        %1258 = vmatprep.subr.mxu0 %v1080
        %1259 = vmatpush1.msra.mxu0 %v1079
        %1260 = vmatprep.subr.mxu0 %v1082
        %1261 = vmatpush1.msra.mxu0 %v1081
        %1262 = vmatprep.subr.mxu0 %v1104
        %1263 = vmatpush1.msra.mxu0 %v1103
        %1264 = vmatprep.subr.mxu0 %v1106
        %1265 = vmatpush1.msra.mxu0 %v1105
        %1266 = vmatprep.subr.mxu0 %v1212
        %1267 = vmatpush1.msra.mxu0 %v1211
        %1268 = vmatprep.subr.mxu0 %v1214
        %1269 = vmatpush1.msra.mxu0 %v1213
        %1270 = vmatprep.subr.mxu0 %v1128
        %1271 = vmatpush1.msra.mxu0 %v1127
        %1272 = vmatprep.subr.mxu0 %v1130
        %1273 = vmatpush1.msra.mxu0 %v1129
        %1274 = vmatprep.subr.mxu0 %v1152
        %1275 = vmatpush1.msra.mxu0 %v1151
        %1276 = vmatprep.subr.mxu0 %v1154
        %1277 = vmatpush1.msra.mxu0 %v1153
        %1278 = vmatprep.subr.mxu0 %v1232
        %1279 = vmatpush1.msra.mxu0 %v1231
        %1280 = vmatprep.subr.mxu0 %v1234
        %1281 = vmatpush1.msra.mxu0 %v1233
        %1282 = vmatprep.subr.mxu0 %v1176
        %1283 = vmatpush1.msra.mxu0 %v1175
        %1284 = vmatprep.subr.mxu0 %v1178
        %1285 = vmatpush1.msra.mxu0 %v1177
        %1286 = vmatprep.subr.mxu0 0.0
        %1287 = vmatpush1.msra.mxu0 0.0
        %1288 = vmatprep.subr.mxu0 0.0
        %1289 = vmatpush1.msra.mxu0 0.0
        %1290 = vmatprep.subr.mxu0 0.0
        %1291 = vmatpush1.msra.mxu0 0.0
        %1292 = vmatprep.subr.mxu0 0.0
        %1293 = vmatpush1.msra.mxu0 0.0
        %1294 = vmatprep.subr.mxu0 0.0
        %1295 = vmatpush1.msra.mxu0 0.0
        %1296 = vmatprep.subr.mxu0 0.0
        %1297 = vmatpush1.msra.mxu0 0.0
        %1298 = vmatprep.subr.mxu0 0.0
        %1299 = vmatpush1.msra.mxu0 0.0
        %1300 = vmatprep.subr.mxu0 0.0
        %1301 = vmatpush1.msra.mxu0 0.0
        %1302 = vmatprep.subr.mxu0 0.0
        %1303 = vmatpush1.msra.mxu0 0.0
        %1304 = vmatprep.subr.mxu0 0.0
        %1305 = vmatpush1.msra.mxu0 0.0
        %1306 = vmatprep.subr.mxu0 0.0
        %1307 = vmatpush1.msra.mxu0 0.0
        %1308 = vmatprep.subr.mxu0 0.0
        %1309 = vmatpush1.msra.mxu0 0.0
        %1310 = vmatprep.subr.mxu0 0.0
        %1311 = vmatpush1.msra.mxu0 0.0
        %1312 = vmatprep.subr.mxu0 0.0
        %1313 = vmatpush1.msra.mxu0 0.0
        %1314 = vmatprep.mubr.f32.mxu0 %v1248
        %1315 = vmatmul.mubr.f32.gmra.mrb[0].mxu0 %v1239
        %v1316 = vpop.f32.mrb[0].mxu0
        %v1317 = vadd.f32 %v1244, %v1316
        %v1318 = vpop.f32.mrb[0].mxu0
        %v1319 = vadd.f32 %v1244, %v1318
        %1320 = vdwg.mxu0
        %vm1321 = vcmp.ge.f32.partialorder %v1317, 0.0
        %vm1322 = vcmp.ge.f32.partialorder %v1319, 0.0
        %v1323 = vmul.f32 %v1317, 0.2
        %v1324 = vmul.f32 %v1319, 0.2
        %v1325 = vsel %vm1321, %v1317, %v1323
        %v1326 = vsel %vm1322, %v1319, %v1324
        %v1327 = vld [vmem:[%s12] sm:$0xff]
        %1330 = vrot.lane.b32.xlu0 %v1325, 17
        %v1331 = vpop.permute.xlu0 %1330
        %1332 = vrot.lane.b32.xlu0 %v1326, 17
        %v1333 = vpop.permute.xlu0 %1332
        %v1334 = vsel %vm475, %v1331, %v1333
        %v1338 = vsel %vm475, 0.0, %v1331
        %v1339 = vsel %vm475, %v1333, 0.0
        %v1340 = vsel %vm486, %v1338, 0.0
        %v1341 = vsel %vm487, %v1334, 0.0
        %1344 = vrot.lane.b32.xlu0 %v1338, 126
        %v1345 = vpop.permute.xlu0 %1344
        %1346 = vrot.lane.b32.xlu0 %v1334, 126
        %v1347 = vpop.permute.xlu0 %1346
        %1348 = vrot.lane.b32.xlu0 %v1339, 126
        %v1349 = vpop.permute.xlu0 %1348
        %v1350 = vsel %vm504, %v1345, %v1347
        %v1351 = vsel %vm504, %v1347, %v1349
        %v1354 = vsel %vm494, %v1350, 0.0
        %v1355 = vsel %vm495, %v1351, 0.0
        %1356 = vrot.lane.b32.xlu0 %v1338, 112
        %v1357 = vpop.permute.xlu0 %1356
        %1358 = vrot.lane.b32.xlu0 %v1334, 112
        %v1359 = vpop.permute.xlu0 %1358
        %1360 = vrot.lane.b32.xlu0 %v1339, 112
        %v1361 = vpop.permute.xlu0 %1360
        %v1362 = vsel %vm517, %v1357, %v1359
        %v1363 = vsel %vm517, %v1359, %v1361
        %v1366 = vsel %vm486, %v1362, 0.0
        %v1367 = vsel %vm487, %v1363, 0.0
        %1368 = vrot.lane.b32.xlu0 %v1338, 110
        %v1369 = vpop.permute.xlu0 %1368
        %1370 = vrot.lane.b32.xlu0 %v1334, 110
        %v1371 = vpop.permute.xlu0 %1370
        %1372 = vrot.lane.b32.xlu0 %v1339, 110
        %v1373 = vpop.permute.xlu0 %1372
        %v1374 = vsel %vm530, %v1369, %v1371
        %v1375 = vsel %vm530, %v1371, %v1373
        %v1378 = vsel %vm494, %v1374, 0.0
        %v1379 = vsel %vm495, %v1375, 0.0
        %1380 = vrot.lane.b32.xlu0 %v1338, 96
        %v1381 = vpop.permute.xlu0 %1380
        %1382 = vrot.lane.b32.xlu0 %v1334, 96
        %v1383 = vpop.permute.xlu0 %1382
        %1384 = vrot.lane.b32.xlu0 %v1339, 96
        %v1385 = vpop.permute.xlu0 %1384
        %v1386 = vsel %vm543, %v1381, %v1383
        %v1387 = vsel %vm543, %v1383, %v1385
        %v1390 = vsel %vm486, %v1386, 0.0
        %v1391 = vsel %vm487, %v1387, 0.0
        %1392 = vrot.lane.b32.xlu0 %v1338, 94
        %v1393 = vpop.permute.xlu0 %1392
        %1394 = vrot.lane.b32.xlu0 %v1334, 94
        %v1395 = vpop.permute.xlu0 %1394
        %1396 = vrot.lane.b32.xlu0 %v1339, 94
        %v1397 = vpop.permute.xlu0 %1396
        %v1398 = vsel %vm556, %v1393, %v1395
        %v1399 = vsel %vm556, %v1395, %v1397
        %v1402 = vsel %vm494, %v1398, 0.0
        %v1403 = vsel %vm495, %v1399, 0.0
        %1404 = vrot.lane.b32.xlu0 %v1338, 127
        %v1405 = vpop.permute.xlu0 %1404
        %1406 = vrot.lane.b32.xlu0 %v1334, 127
        %v1407 = vpop.permute.xlu0 %1406
        %1408 = vrot.lane.b32.xlu0 %v1339, 127
        %v1409 = vpop.permute.xlu0 %1408
        %v1410 = vsel %vm569, %v1405, %v1407
        %v1411 = vsel %vm569, %v1407, %v1409
        %1414 = vrot.lane.b32.xlu0 %v1338, 111
        %v1415 = vpop.permute.xlu0 %1414
        %1416 = vrot.lane.b32.xlu0 %v1334, 111
        %v1417 = vpop.permute.xlu0 %1416
        %1418 = vrot.lane.b32.xlu0 %v1339, 111
        %v1419 = vpop.permute.xlu0 %1418
        %v1420 = vsel %vm580, %v1415, %v1417
        %v1421 = vsel %vm580, %v1417, %v1419
        %1424 = vrot.lane.b32.xlu0 %v1338, 95
        %v1425 = vpop.permute.xlu0 %1424
        %1426 = vrot.lane.b32.xlu0 %v1334, 95
        %v1427 = vpop.permute.xlu0 %1426
        %1428 = vrot.lane.b32.xlu0 %v1339, 95
        %v1429 = vpop.permute.xlu0 %1428
        %v1430 = vsel %vm591, %v1425, %v1427
        %v1431 = vsel %vm591, %v1427, %v1429
        %v1434 = vld [vmem:[%s11] sm:$0xff]
        %1436 = vset.pattern.permute.xlu0 0
        %1437 = vperm.xlu0 %1436, %v1327
        %v1438 = vpop.permute.xlu0 %1437
        %v1441 = vsel %vm602, %v1434, 0
        %1443 = vmatprep.subr.mxu0 %v1341
        %1444 = vmatpush1.msra.mxu0 %v1340
        %1445 = vmatprep.subr.mxu0 %v1411
        %1446 = vmatpush1.msra.mxu0 %v1410
        %1447 = vmatprep.subr.mxu0 %v1355
        %1448 = vmatpush1.msra.mxu0 %v1354
        %1449 = vmatprep.subr.mxu0 %v1367
        %1450 = vmatpush1.msra.mxu0 %v1366
        %1451 = vmatprep.subr.mxu0 %v1421
        %1452 = vmatpush1.msra.mxu0 %v1420
        %1453 = vmatprep.subr.mxu0 %v1379
        %1454 = vmatpush1.msra.mxu0 %v1378
        %1455 = vmatprep.subr.mxu0 %v1391
        %1456 = vmatpush1.msra.mxu0 %v1390
        %1457 = vmatprep.subr.mxu0 %v1431
        %1458 = vmatpush1.msra.mxu0 %v1430
        %1459 = vmatprep.subr.mxu0 %v1403
        %1460 = vmatpush1.msra.mxu0 %v1402
        %1461 = vmatprep.subr.mxu0 0.0
        %1462 = vmatpush1.msra.mxu0 0.0
        %1463 = vmatprep.subr.mxu0 0.0
        %1464 = vmatpush1.msra.mxu0 0.0
        %1465 = vmatprep.subr.mxu0 0.0
        %1466 = vmatpush1.msra.mxu0 0.0
        %1467 = vmatprep.subr.mxu0 0.0
        %1468 = vmatpush1.msra.mxu0 0.0
        %1469 = vmatprep.subr.mxu0 0.0
        %1470 = vmatpush1.msra.mxu0 0.0
        %1471 = vmatprep.subr.mxu0 0.0
        %1472 = vmatpush1.msra.mxu0 0.0
        %1473 = vmatprep.subr.mxu0 0.0
        %1474 = vmatpush1.msra.mxu0 0.0
        %1475 = vmatprep.subr.mxu0 0.0
        %1476 = vmatpush1.msra.mxu0 0.0
        %1477 = vmatprep.subr.mxu0 0.0
        %1478 = vmatpush1.msra.mxu0 0.0
        %1479 = vmatprep.subr.mxu0 0.0
        %1480 = vmatpush1.msra.mxu0 0.0
        %1481 = vmatprep.subr.mxu0 0.0
        %1482 = vmatpush1.msra.mxu0 0.0
        %1483 = vmatprep.subr.mxu0 0.0
        %1484 = vmatpush1.msra.mxu0 0.0
        %1485 = vmatprep.subr.mxu0 0.0
        %1486 = vmatpush1.msra.mxu0 0.0
        %1487 = vmatprep.subr.mxu0 0.0
        %1488 = vmatpush1.msra.mxu0 0.0
        %1489 = vmatprep.subr.mxu0 0.0
        %1490 = vmatpush1.msra.mxu0 0.0
        %1491 = vmatprep.subr.mxu0 0.0
        %1492 = vmatpush1.msra.mxu0 0.0
        %1493 = vmatprep.subr.mxu0 0.0
        %1494 = vmatpush1.msra.mxu0 0.0
        %1495 = vmatprep.subr.mxu0 0.0
        %1496 = vmatpush1.msra.mxu0 0.0
        %1497 = vmatprep.subr.mxu0 0.0
        %1498 = vmatpush1.msra.mxu0 0.0
        %1499 = vmatprep.subr.mxu0 0.0
        %1500 = vmatpush1.msra.mxu0 0.0
        %1501 = vmatprep.subr.mxu0 0.0
        %1502 = vmatpush1.msra.mxu0 0.0
        %1503 = vmatprep.subr.mxu0 0.0
        %1504 = vmatpush1.msra.mxu0 0.0
        %1505 = vmatprep.subr.mxu0 0.0
        %1506 = vmatpush1.msra.mxu0 0.0
        %1507 = vmatprep.mubr.f32.mxu0 0.0
        %1508 = vmatmul.mubr.f32.gmra.mrb[0].mxu0 %v1441
        %v1509 = vpop.f32.mrb[0].mxu0
        %v1510 = vadd.f32 %v1438, %v1509
        %v1511 = vpop.f32.mrb[0].mxu0
        %v1512 = vadd.f32 %v1438, %v1511
        %1513 = vdwg.mxu0
        %vm1514 = vcmp.ge.f32.partialorder %v1510, 0.0
        %vm1515 = vcmp.ge.f32.partialorder %v1512, 0.0
        %v1516 = vmul.f32 %v1510, 0.2
        %v1517 = vmul.f32 %v1512, 0.2
        %v1518 = vsel %vm1514, %v1510, %v1516
        %v1519 = vsel %vm1515, %v1512, %v1517
        %1520 = vst [vmem:[%s433] sm:$0xff] %v1518
        %1521 = vst [vmem:[%s433 + $0x8] sm:$0xff] %v1519
        %s1522 = sand.u32 %s313, 1
        %s1523 = scalar_lea.sflag [#allocation3], %s1522
        %s1524 = sand.u32 %s313, 1
        %s1525 = smul.addr %s1524, 16
        %s1526 = scalar_lea.vmem [#allocation2], %s1525
        // Predicated region
        $region73: #{tpu_custom_call.1} parent=71 // pred_check
          %p1527 = pneg %p323
        $region74: #{tpu_custom_call.1} parent=71 // pred_check_branch
          %1529 = sbr.rel (%p1527) target = $region76
        $region75: #{tpu_custom_call.1} parent=71 // pred_region
          %s1531 = ssub.s32 256, 256
          %1532 = vsyncadd %s1523, %s1531
          %s1533 = smul.addr %s27, 2
          %s1534 = smul.addr %s1533, 128
          %s1535 = scalar_lea.hbm %s13, %s1534
          %s1537 = sshll.u32 %s1526, 4
          %s1538 = int_to_ptr.vmem [resolvable:$true] %s1537
          %1540 = dma.vmem_to_hbm [thread:$0]  %s1538, 256, %s1535, %s1523
        $region76: #{tpu_custom_call.1} parent=71 // pred_fallthru
          _
      $region72: #{tpu_custom_call.1} parent=5 // pred_fallthru
        _
      %p1541 = scmp.le.s32.totalorder 2, %s22
      // Predicated region
      $region77: #{tpu_custom_call.1} parent=5 // pred_check
        %p1542 = pneg %p1541
      $region78: #{tpu_custom_call.1} parent=5 // pred_check_branch
        %1544 = sbr.rel (%p1542) target = $region80
      $region79: #{tpu_custom_call.1} parent=5 // pred_region
        %s1545 = ssub.s32 %s22, 2
        // Predicated region
        $region81: #{tpu_custom_call.1} parent=79 // pred_check
          %p1546 = pneg %p329
        $region82: #{tpu_custom_call.1} parent=79 // pred_check_branch
          %1548 = sbr.rel (%p1546) target = $region84
        $region83: #{tpu_custom_call.1} parent=79 // pred_region
          %s1549 = sand.u32 %s314, 1
          %s1550 = scalar_lea.sflag [#allocation3], %s1549
          %s1551 = sand.u32 %s314, 1
          %s1552 = smul.addr %s1551, 16
          %s1553 = scalar_lea.vmem [#allocation2], %s1552
          %1554 = dma.done %s1550, 256
        $region84: #{tpu_custom_call.1} parent=79 // pred_fallthru
          _
      $region80: #{tpu_custom_call.1} parent=5 // pred_fallthru
        _
    $region6: #{tpu_custom_call.1} parent=1 // loop_footer
      %s26 = sadd.s32 1, %s22
    $region7: #{tpu_custom_call.1} parent=1 // loop_footer_branch
      %21 = sbr.rel target = $region3
    $region8: #{tpu_custom_call.1} parent=1 // loop_exit
      _
    %1555 = vsyncpa [#allocation3], 1
    %s1556 = scalar_lea.sflag [#allocation3], 1
    %1557 = vsyncpa %s1556, 1

</llo_original>
